<compile_context>
chip_gen: v5e
topology: v5e:2x2
jax: 0.10.0
libtpu: 0.0.40
codegen_flags: <defaults>
</compile_context>

<pallas_src>
import jax
import jax.numpy as jnp
from jax.experimental import pallas as pl
from jax.experimental.pallas import tpu as pltpu


def _round_up(x, m):
    return (x + m - 1) // m * m


def mwe_mlp_kernel(ids_ref, m_ref, b1_ref, w2_ref, b2_ref, out_ref):
    # ids_ref: (TB, L)      int32 token ids for this batch tile
    # m_ref:   (L*Vp, H)    bf16 fused emb@W1 table (vocab padded to 128/l-block)
    # b1_ref:  (1, H)       f32 hidden bias
    # w2_ref:  (H, Tp)      bf16 FFW weight, tag axis padded to 128 lanes
    # b2_ref:  (1, Tp)      f32 FFW bias (-1e30 in padded tag lanes)
    # out_ref: (TB, Tp)     f32 log-probabilities (padded lanes sliced off outside)
    TB, L = ids_ref.shape
    LVp, H = m_ref.shape
    Vp = LVp // L

    ids = ids_ref[...]                                              # (TB, L) int32
    lane_iota = jax.lax.broadcasted_iota(jnp.int32, (TB, LVp), 1)   # lane-dense iota

    # Fused one-hot over all window positions: column l*Vp + v is 1 iff token at
    # window position l equals v.  ids < V <= Vp, so each compare hits only
    # inside its own l-block; exactly L ones per row.  Direct bool->bf16 cast.
    hit = None
    for l in range(L):  # L is tiny (1 + 2*window); static unrolled loop
        hit_l = lane_iota == (ids[:, l:l + 1] + l * Vp)
        hit = hit_l if hit is None else jnp.logical_or(hit, hit_l)
    onehot = hit.astype(jnp.bfloat16)                               # (TB, L*Vp)

    # hidden = ReLU(flatten(emb) @ W1 + b1) == ReLU(onehot @ M + b1)
    # (M = per-window emb@W1 fold, precomputed in f32 and cast once to bf16).
    h = jnp.dot(onehot, m_ref[...], preferred_element_type=jnp.float32)  # (TB, H)
    h = jnp.maximum(h + b1_ref[...], 0.0)                                # f32

    # FFW: Linear(H, T), tag axis lane-padded; padded lanes get -1e30 bias so
    # they contribute exp(.)=0 to the softmax normalizer.
    logits = jnp.dot(h.astype(jnp.bfloat16), w2_ref[...],
                     preferred_element_type=jnp.float32) + b2_ref[...]

    # LogSoftmax over dim=1 (the tag axis)
    mx = jnp.max(logits, axis=-1, keepdims=True)
    s = logits - mx
    lse = jnp.log(jnp.sum(jnp.exp(s), axis=-1, keepdims=True))
    out_ref[...] = (s - lse).astype(out_ref.dtype)


def prepare_params(emb_table, w1, b1, w2, b2):
    """One-time trace-time prep: fold emb@W1, pad vocab & tag axes, cast to bf16."""
    V, E = emb_table.shape
    LE, H = w1.shape
    L = LE // E
    T = w2.shape[1]
    Vp = _round_up(V, 128)   # lane-dense per-window block in the fused one-hot
    Tp = _round_up(T, 128)   # lane-dense (unmasked-store) tag axis

    # M_l = emb_table @ W1[l*E:(l+1)*E, :]  (fold done in f32, single bf16 cast)
    w1_3d = w1.reshape(L, E, H).astype(jnp.float32)
    m = jnp.einsum('ve,leh->lvh', emb_table.astype(jnp.float32), w1_3d)  # (L, V, H)
    m = jnp.zeros((L, Vp, H), jnp.float32).at[:, :V, :].set(m)
    m_b = m.reshape(L * Vp, H).astype(jnp.bfloat16)

    b1_r = b1.reshape(1, H).astype(jnp.float32)
    w2_p = jnp.zeros((H, Tp), jnp.bfloat16).at[:, :T].set(w2.astype(jnp.bfloat16))
    b2_p = jnp.full((1, Tp), -1e30, jnp.float32).at[0, :T].set(b2.astype(jnp.float32))

    return dict(m=m_b, b1=b1_r, w2=w2_p, b2=b2_p, L=L, Vp=Vp, Tp=Tp, T=T, H=H)


def mwe_classifier_forward(tok_ids, params, *, batch_tile=256):
    """Full MweClassifier('MLP') forward. tok_ids: (B, L) int32 -> (B, T) f32 log-probs.

    batch_tile: rows per grid step. 256 keeps >=2 grid steps at moderate batch
    sizes (both v7x TensorCores busy); raise to 512-1024 on v6e/v5e for very
    large batches to amortize per-step pipeline overhead.
    """
    L, Vp, Tp, T, H = params['L'], params['Vp'], params['Tp'], params['T'], params['H']
    B, L_in = tok_ids.shape
    assert L_in == L

    TB = min(batch_tile, _round_up(B, 8))
    Bp = _round_up(B, TB)
    ids_p = jnp.pad(tok_ids.astype(jnp.int32), ((0, Bp - B), (0, 0)))

    const = lambda shape: pl.BlockSpec(shape, lambda i: (0,) * len(shape))
    out = pl.pallas_call(
        mwe_mlp_kernel,
        grid=(Bp // TB,),
        in_specs=[
            pl.BlockSpec((TB, L), lambda i: (i, 0)),   # token ids: streamed per tile
            const((L * Vp, H)),                        # fused emb@W1 table (VMEM-resident)
            const((1, H)),                             # b1
            const((H, Tp)),                            # w2 (tag-padded)
            const((1, Tp)),                            # b2 (tag-padded)
        ],
        out_specs=pl.BlockSpec((TB, Tp), lambda i: (i, 0)),
        out_shape=jax.ShapeDtypeStruct((Bp, Tp), jnp.float32),
        compiler_params=pltpu.CompilerParams(
            dimension_semantics=("parallel",)),
    )(ids_p, params['m'], params['b1'], params['w2'], params['b2'])
    return out[:B, :T]


if __name__ == "__main__":
    # Configuration consistent with the module defaults
    # (emb_size=64, hidden_size=64, window_size=1 -> input_length L=3).
    vocab_size = 50          # len(toks_vocab)
    num_tags = 8             # len(tags_vocab)
    window_size = 1
    L = 1 + 2 * window_size  # input_length = 3
    emb_size = 64
    hidden_size = 64
    batch = 512              # 2 grid steps of 256 rows (keeps both v7x TCs busy)

    key = jax.random.PRNGKey(0)
    k_emb, k_w1, k_b1, k_w2, k_b2, k_ids = jax.random.split(key, 6)

    emb_table = jax.random.normal(k_emb, (vocab_size, emb_size), jnp.float32) * 0.1
    w1 = jax.random.normal(k_w1, (emb_size * L, hidden_size), jnp.float32) * 0.05
    b1 = jax.random.normal(k_b1, (hidden_size,), jnp.float32) * 0.01
    w2 = jax.random.normal(k_w2, (hidden_size, num_tags), jnp.float32) * 0.05
    b2 = jax.random.normal(k_b2, (num_tags,), jnp.float32) * 0.01

    tok_ids = jax.random.randint(k_ids, (batch, L), 0, vocab_size, jnp.int32)

    params = prepare_params(emb_table, w1, b1, w2, b2)   # once per set of weights
    logprobs = mwe_classifier_forward(tok_ids, params)
    jax.block_until_ready(logprobs)
    assert logprobs.shape == (batch, num_tags)

    # Sanity check against plain-JAX f32 reference (kernel matmuls run in bf16,
    # so use a bf16-appropriate tolerance).
    x_ref = jnp.take(emb_table, tok_ids, axis=0).reshape(batch, L * emb_size)
    h_ref = jnp.maximum(x_ref @ w1 + b1, 0.0)
    logits_ref = h_ref @ w2 + b2
    ref = jax.nn.log_softmax(logits_ref, axis=1)
    max_err = float(jnp.max(jnp.abs(logprobs - ref)))
    assert jnp.allclose(logprobs, ref, atol=2e-2, rtol=2e-2), max_err
    assert bool(jnp.all(jnp.isfinite(logprobs)))

    print("KERNEL_OK")
</pallas_src>

<mosaic_0001>
module attributes {stable_mosaic.version = 11 : i64} {
  func.func @mwe_mlp_kernel(%arg0: i32, %arg1: memref<256x3xi32, #tpu.memory_space<vmem>>, %arg2: memref<384x64xbf16, #tpu.memory_space<vmem>>, %arg3: memref<1x64xf32, #tpu.memory_space<vmem>>, %arg4: memref<64x128xbf16, #tpu.memory_space<vmem>>, %arg5: memref<1x128xf32, #tpu.memory_space<vmem>>, %arg6: memref<256x128xf32, #tpu.memory_space<vmem>>) attributes {dimension_semantics = [#tpu.dimension_semantics<parallel>], iteration_bounds = array<i64: 2>, scalar_prefetch = 0 : i64, scratch_operands = 0 : i64, tpu.core_type = #tpu.core_type<tc>, window_params = [{transform_indices = @transform_0, window_bounds = array<i64: 256, 3>}, {pipeline_mode = #tpu.pipeline_mode<synchronous>, transform_indices = @transform_1, window_bounds = array<i64: 384, 64>}, {pipeline_mode = #tpu.pipeline_mode<synchronous>, transform_indices = @transform_2, window_bounds = array<i64: 1, 64>}, {pipeline_mode = #tpu.pipeline_mode<synchronous>, transform_indices = @transform_3, window_bounds = array<i64: 64, 128>}, {pipeline_mode = #tpu.pipeline_mode<synchronous>, transform_indices = @transform_4, window_bounds = array<i64: 1, 128>}, {transform_indices = @transform_5, window_bounds = array<i64: 256, 128>}]} {
    %c0 = arith.constant 0 : index
    %c0_0 = arith.constant 0 : index
    %0 = vector.load %arg1[%c0, %c0_0] : memref<256x3xi32, #tpu.memory_space<vmem>>, vector<256x3xi32>
    %1 = tpu.iota {dimensions = array<i32: 1>} : vector<256x384xi32>
    %2 = vector.extract_strided_slice %0 {offsets = [0, 0], sizes = [256, 1], strides = [1, 1]} : vector<256x3xi32> to vector<256x1xi32>
    %c0_i32 = arith.constant 0 : i32
    %3 = vector.broadcast %c0_i32 : i32 to vector<256x1xi32>
    %4 = arith.addi %2, %3 : vector<256x1xi32>
    %5 = vector.broadcast %4 : vector<256x1xi32> to vector<256x384xi32>
    %6 = arith.cmpi eq, %1, %5 : vector<256x384xi32>
    %7 = vector.extract_strided_slice %0 {offsets = [0, 1], sizes = [256, 1], strides = [1, 1]} : vector<256x3xi32> to vector<256x1xi32>
    %c128_i32 = arith.constant 128 : i32
    %8 = vector.broadcast %c128_i32 : i32 to vector<256x1xi32>
    %9 = arith.addi %7, %8 : vector<256x1xi32>
    %10 = vector.broadcast %9 : vector<256x1xi32> to vector<256x384xi32>
    %11 = arith.cmpi eq, %1, %10 : vector<256x384xi32>
    %12 = arith.ori %6, %11 : vector<256x384xi1>
    %13 = vector.extract_strided_slice %0 {offsets = [0, 2], sizes = [256, 1], strides = [1, 1]} : vector<256x3xi32> to vector<256x1xi32>
    %c256_i32 = arith.constant 256 : i32
    %14 = vector.broadcast %c256_i32 : i32 to vector<256x1xi32>
    %15 = arith.addi %13, %14 : vector<256x1xi32>
    %16 = vector.broadcast %15 : vector<256x1xi32> to vector<256x384xi32>
    %17 = arith.cmpi eq, %1, %16 : vector<256x384xi32>
    %18 = arith.ori %12, %17 : vector<256x384xi1>
    %19 = arith.extui %18 : vector<256x384xi1> to vector<256x384xi32>
    %20 = arith.sitofp %19 : vector<256x384xi32> to vector<256x384xf32>
    %21 = arith.truncf %20 : vector<256x384xf32> to vector<256x384xbf16>
    %c0_1 = arith.constant 0 : index
    %c0_2 = arith.constant 0 : index
    %22 = vector.load %arg2[%c0_1, %c0_2] : memref<384x64xbf16, #tpu.memory_space<vmem>>, vector<384x64xbf16>
    %cst = arith.constant dense<0.000000e+00> : vector<256x64xf32>
    %23 = tpu.matmul %21, %22, %cst {dimension_numbers = #tpu.dot_dimension_numbers<[1], [0], [0], [1], [0, 0, 1, 1], [], []>} : vector<256x384xbf16>, vector<384x64xbf16>, vector<256x64xf32> -> vector<256x64xf32>
    %c0_3 = arith.constant 0 : index
    %c0_4 = arith.constant 0 : index
    %24 = vector.load %arg3[%c0_3, %c0_4] : memref<1x64xf32, #tpu.memory_space<vmem>>, vector<1x64xf32>
    %25 = vector.broadcast %24 : vector<1x64xf32> to vector<256x64xf32>
    %26 = arith.addf %23, %25 : vector<256x64xf32>
    %cst_5 = arith.constant 0.000000e+00 : f32
    %27 = vector.broadcast %cst_5 : f32 to vector<256x64xf32>
    %28 = arith.maximumf %26, %27 : vector<256x64xf32>
    %29 = arith.truncf %28 : vector<256x64xf32> to vector<256x64xbf16>
    %c0_6 = arith.constant 0 : index
    %c0_7 = arith.constant 0 : index
    %30 = vector.load %arg4[%c0_6, %c0_7] : memref<64x128xbf16, #tpu.memory_space<vmem>>, vector<64x128xbf16>
    %cst_8 = arith.constant dense<0.000000e+00> : vector<256x128xf32>
    %31 = tpu.matmul %29, %30, %cst_8 {dimension_numbers = #tpu.dot_dimension_numbers<[1], [0], [0], [1], [0, 0, 1, 1], [], []>} : vector<256x64xbf16>, vector<64x128xbf16>, vector<256x128xf32> -> vector<256x128xf32>
    %c0_9 = arith.constant 0 : index
    %c0_10 = arith.constant 0 : index
    %32 = vector.load %arg5[%c0_9, %c0_10] : memref<1x128xf32, #tpu.memory_space<vmem>>, vector<1x128xf32>
    %33 = vector.broadcast %32 : vector<1x128xf32> to vector<256x128xf32>
    %34 = arith.addf %31, %33 : vector<256x128xf32>
    %cst_11 = arith.constant dense<0xFF800000> : vector<256xf32>
    %35 = vector.multi_reduction <maximumf>, %34, %cst_11 [1] : vector<256x128xf32> to vector<256xf32>
    %36 = vector.shape_cast %35 : vector<256xf32> to vector<256x1xf32>
    %37 = vector.broadcast %36 : vector<256x1xf32> to vector<256x128xf32>
    %38 = arith.subf %34, %37 : vector<256x128xf32>
    %39 = math.exp %38 : vector<256x128xf32>
    %cst_12 = arith.constant dense<0.000000e+00> : vector<256xf32>
    %40 = vector.multi_reduction <add>, %39, %cst_12 [1] : vector<256x128xf32> to vector<256xf32>
    %41 = vector.shape_cast %40 : vector<256xf32> to vector<256x1xf32>
    %42 = math.log %41 : vector<256x1xf32>
    %43 = vector.broadcast %42 : vector<256x1xf32> to vector<256x128xf32>
    %44 = arith.subf %38, %43 : vector<256x128xf32>
    %c0_13 = arith.constant 0 : index
    %c0_14 = arith.constant 0 : index
    %45 = vector.load %arg6[%c0_13, %c0_14] : memref<256x128xf32, #tpu.memory_space<vmem>>, vector<256x128xf32>
    tpu.vector_store %arg6[%c0_13, %c0_14], %44 {strides = array<i32>} : memref<256x128xf32, #tpu.memory_space<vmem>>, vector<256x128xf32>,
    return
  }
  func.func @transform_0(%arg0: i32) -> (i32, i32) {
    %c0_i32 = arith.constant 0 : i32
    %c0_i32_0 = arith.constant 0 : i32
    return %arg0, %c0_i32 : i32, i32
  }
  func.func @transform_1(%arg0: i32) -> (i32, i32) {
    %c0_i32 = arith.constant 0 : i32
    %c0_i32_0 = arith.constant 0 : i32
    %c0_i32_1 = arith.constant 0 : i32
    return %c0_i32, %c0_i32_0 : i32, i32
  }
  func.func @transform_2(%arg0: i32) -> (i32, i32) {
    %c0_i32 = arith.constant 0 : i32
    %c0_i32_0 = arith.constant 0 : i32
    %c0_i32_1 = arith.constant 0 : i32
    return %c0_i32, %c0_i32_0 : i32, i32
  }
  func.func @transform_3(%arg0: i32) -> (i32, i32) {
    %c0_i32 = arith.constant 0 : i32
    %c0_i32_0 = arith.constant 0 : i32
    %c0_i32_1 = arith.constant 0 : i32
    return %c0_i32, %c0_i32_0 : i32, i32
  }
  func.func @transform_4(%arg0: i32) -> (i32, i32) {
    %c0_i32 = arith.constant 0 : i32
    %c0_i32_0 = arith.constant 0 : i32
    %c0_i32_1 = arith.constant 0 : i32
    return %c0_i32, %c0_i32_0 : i32, i32
  }
  func.func @transform_5(%arg0: i32) -> (i32, i32) {
    %c0_i32 = arith.constant 0 : i32
    %c0_i32_0 = arith.constant 0 : i32
    return %arg0, %c0_i32 : i32, i32
  }
}

</mosaic_0001>

<llo_original>
// kernel: tpu_custom_call.1
$region0: #{tpu_custom_call.1}
  #allocation0 [shape = 'u32[]', space=smem, size = 0x4, offset = 0x4, fixed_abs, tag = 'smem constant byte address 0x4 - core index']
  #allocation1 [shape = 'u32[72,128]{1,0:T(1,128)}', space=vmem, size = 0x9000, scoped, tag = 'internal scratch']
  %s0 = inlined_call_operand.vmem [shape: s32[512,3], index: 0, kind: input, shape index: {}]
  %s1 = inlined_call_operand.vmem [shape: bf16[384,64], index: 1, kind: input, shape index: {}]
  %s2 = inlined_call_operand.vmem [shape: f32[1,64], index: 2, kind: input, shape index: {}]
  %s3 = inlined_call_operand.vmem [shape: bf16[64,128], index: 3, kind: input, shape index: {}]
  %s4 = inlined_call_operand.vmem [shape: f32[1,128], index: 4, kind: input, shape index: {}]
  %s5 = inlined_call_operand.hbm [shape: f32[512,128], index: 5, kind: output, shape index: {}]
  %s6 = sld [smem:[#allocation0]]
  $region53: #{tpu_custom_call.1} parent=0
    _
  %s8 = ssub.s32 1, %s6
  %s9 = scalar_select 0, %s8, %s6
  $region1: #{tpu_custom_call.1} parent=0
    #allocation2 [shape = 'u8[262144]{0}', space=vmem, size = 0x40000, scoped, tag = 'output window, operand 0']
    #allocation3 [shape = 's32[2]{0}', space=sflag, size = 0x8, scoped, tag = 'scoped memory for tpu_custom_call.1']
    %10 = vsyncpa [#allocation3], 0
    %s11 = scalar_lea.sflag [#allocation3], 1
    %12 = vsyncpa %s11, 0
    loop: start=0, step=1, limit=4
    $region2: #{tpu_custom_call.1} parent=1 // loop_pre_header
      _
    $region3: #{tpu_custom_call.1} parent=1 // loop_header
      %s14 = sphi 0, %s18
      %p15 = scmp.ge.s32.totalorder %s14, 4
      %s24 = sphi 0, %s26
      %s27 = sphi 0, %s24
      %s28 = sphi 0, %s27
      %s44 = sphi 0, %s28
      %s48 = sphi 0, %s48
      %s50 = sphi 0, %s48
      %s51 = sphi 0, %s50
      %s65 = sphi 0, %s51
      %s69 = sphi 0, %s69
      %s71 = sphi 0, %s69
      %s72 = sphi 0, %s71
      %s86 = sphi 0, %s72
      %s90 = sphi 0, %s90
      %s92 = sphi 0, %s90
      %s93 = sphi 0, %s92
      %s107 = sphi 0, %s93
      %s111 = sphi 0, %s111
      %s113 = sphi 0, %s111
      %s114 = sphi 0, %s113
      %s128 = sphi 0, %s114
      %s134 = sphi 0, %s136
      %s137 = sphi 0, %s134
      %s138 = sphi 0, %s137
      %s154 = sphi 0, %s138
    $region4: #{tpu_custom_call.1} parent=1 // loop_header_branch
      %17 = sbr.rel (%p15) target = $region8
    $region5: #{tpu_custom_call.1} parent=1 // loop_body
      %s19 = ssub.s32 %s14, 1
      %s20 = ssub.s32 %s14, 2
      %s21 = sadd.s32 %s14, 1
      %s22 = ssub.s32 %s14, %s21
      %p23 = scmp.eq.s32.totalorder %s22, 0
      %s25 = sadd.s32 %s24, 1
      %s26 = scalar_select %p23, %s24, %s25
      %p29 = pneg %p23
      %p30 = scmp.eq.s32.totalorder %s14, 1
      %p31 = por %p29, %p30
      %p32 = scmp.ne.s32.totalorder %s24, %s27
      %p33 = scmp.eq.s32.totalorder %s14, 0
      %p34 = por %p32, %p33
      %p35 = scmp.ne.s32.totalorder %s24, %s27
      %p36 = scmp.eq.s32.totalorder %s19, 1
      %p37 = por %p35, %p36
      %p38 = scmp.ne.s32.totalorder %s27, %s28
      %p39 = scmp.eq.s32.totalorder %s19, 0
      %p40 = por %p38, %p39
      %p41 = scmp.ne.s32.totalorder %s27, %s28
      %p42 = scmp.eq.s32.totalorder %s20, 1
      %p43 = por %p41, %p42
      %p45 = scmp.ne.s32.totalorder %s28, %s44
      %p46 = scmp.eq.s32.totalorder %s20, 0
      %p47 = por %p45, %p46
      %s49 = sadd.s32 %s48, 1
      %p52 = scmp.eq.s32.totalorder %s14, 1
      %p53 = scmp.ne.s32.totalorder %s48, %s50
      %p54 = scmp.eq.s32.totalorder %s14, 0
      %p55 = por %p53, %p54
      %p56 = scmp.ne.s32.totalorder %s48, %s50
      %p57 = scmp.eq.s32.totalorder %s19, 1
      %p58 = por %p56, %p57
      %p59 = scmp.ne.s32.totalorder %s50, %s51
      %p60 = scmp.eq.s32.totalorder %s19, 0
      %p61 = por %p59, %p60
      %p62 = scmp.ne.s32.totalorder %s50, %s51
      %p63 = scmp.eq.s32.totalorder %s20, 1
      %p64 = por %p62, %p63
      %p66 = scmp.ne.s32.totalorder %s51, %s65
      %p67 = scmp.eq.s32.totalorder %s20, 0
      %p68 = por %p66, %p67
      %s70 = sadd.s32 %s69, 1
      %p73 = scmp.eq.s32.totalorder %s14, 1
      %p74 = scmp.ne.s32.totalorder %s69, %s71
      %p75 = scmp.eq.s32.totalorder %s14, 0
      %p76 = por %p74, %p75
      %p77 = scmp.ne.s32.totalorder %s69, %s71
      %p78 = scmp.eq.s32.totalorder %s19, 1
      %p79 = por %p77, %p78
      %p80 = scmp.ne.s32.totalorder %s71, %s72
      %p81 = scmp.eq.s32.totalorder %s19, 0
      %p82 = por %p80, %p81
      %p83 = scmp.ne.s32.totalorder %s71, %s72
      %p84 = scmp.eq.s32.totalorder %s20, 1
      %p85 = por %p83, %p84
      %p87 = scmp.ne.s32.totalorder %s72, %s86
      %p88 = scmp.eq.s32.totalorder %s20, 0
      %p89 = por %p87, %p88
      %s91 = sadd.s32 %s90, 1
      %p94 = scmp.eq.s32.totalorder %s14, 1
      %p95 = scmp.ne.s32.totalorder %s90, %s92
      %p96 = scmp.eq.s32.totalorder %s14, 0
      %p97 = por %p95, %p96
      %p98 = scmp.ne.s32.totalorder %s90, %s92
      %p99 = scmp.eq.s32.totalorder %s19, 1
      %p100 = por %p98, %p99
      %p101 = scmp.ne.s32.totalorder %s92, %s93
      %p102 = scmp.eq.s32.totalorder %s19, 0
      %p103 = por %p101, %p102
      %p104 = scmp.ne.s32.totalorder %s92, %s93
      %p105 = scmp.eq.s32.totalorder %s20, 1
      %p106 = por %p104, %p105
      %p108 = scmp.ne.s32.totalorder %s93, %s107
      %p109 = scmp.eq.s32.totalorder %s20, 0
      %p110 = por %p108, %p109
      %s112 = sadd.s32 %s111, 1
      %p115 = scmp.eq.s32.totalorder %s14, 1
      %p116 = scmp.ne.s32.totalorder %s111, %s113
      %p117 = scmp.eq.s32.totalorder %s14, 0
      %p118 = por %p116, %p117
      %p119 = scmp.ne.s32.totalorder %s111, %s113
      %p120 = scmp.eq.s32.totalorder %s19, 1
      %p121 = por %p119, %p120
      %p122 = scmp.ne.s32.totalorder %s113, %s114
      %p123 = scmp.eq.s32.totalorder %s19, 0
      %p124 = por %p122, %p123
      %p125 = scmp.ne.s32.totalorder %s113, %s114
      %p126 = scmp.eq.s32.totalorder %s20, 1
      %p127 = por %p125, %p126
      %p129 = scmp.ne.s32.totalorder %s114, %s128
      %p130 = scmp.eq.s32.totalorder %s20, 0
      %p131 = por %p129, %p130
      %s132 = ssub.s32 %s14, %s21
      %p133 = scmp.eq.s32.totalorder %s132, 0
      %s135 = sadd.s32 %s134, 1
      %s136 = scalar_select %p133, %s134, %s135
      %p139 = pneg %p133
      %p140 = scmp.eq.s32.totalorder %s14, 1
      %p141 = por %p139, %p140
      %p142 = scmp.ne.s32.totalorder %s134, %s137
      %p143 = scmp.eq.s32.totalorder %s14, 0
      %p144 = por %p142, %p143
      %p145 = scmp.ne.s32.totalorder %s134, %s137
      %p146 = scmp.eq.s32.totalorder %s19, 1
      %p147 = por %p145, %p146
      %p148 = scmp.ne.s32.totalorder %s137, %s138
      %p149 = scmp.eq.s32.totalorder %s19, 0
      %p150 = por %p148, %p149
      %p151 = scmp.ne.s32.totalorder %s137, %s138
      %p152 = scmp.eq.s32.totalorder %s20, 1
      %p153 = por %p151, %p152
      %p155 = scmp.ne.s32.totalorder %s138, %s154
      %p156 = scmp.eq.s32.totalorder %s20, 0
      %p157 = por %p155, %p156
      %p158 = scmp.le.s32.totalorder 1, %s14
      %p159 = scmp.lt.s32.totalorder %s14, 3
      %p160 = pnand %p158, %p159
      %p161 = pneg %p160
      // Predicated region
      $region9: #{tpu_custom_call.1} parent=5 // pred_check
        _
      $region10: #{tpu_custom_call.1} parent=5 // pred_check_branch
        %163 = sbr.rel (%p160) target = $region12
      $region11: #{tpu_custom_call.1} parent=5 // pred_region
        %s164 = ssub.s32 %s14, 1
        // Predicated region
        $region13: #{tpu_custom_call.1} parent=11 // pred_check
          %p165 = pneg %p61
        $region14: #{tpu_custom_call.1} parent=11 // pred_check_branch
          %167 = sbr.rel (%p165) target = $region16
        $region15: #{tpu_custom_call.1} parent=11 // pred_region
          _
        $region16: #{tpu_custom_call.1} parent=11 // pred_fallthru
          _
        // Predicated region
        $region17: #{tpu_custom_call.1} parent=11 // pred_check
          %p168 = pneg %p82
        $region18: #{tpu_custom_call.1} parent=11 // pred_check_branch
          %170 = sbr.rel (%p168) target = $region20
        $region19: #{tpu_custom_call.1} parent=11 // pred_region
          _
        $region20: #{tpu_custom_call.1} parent=11 // pred_fallthru
          _
        // Predicated region
        $region21: #{tpu_custom_call.1} parent=11 // pred_check
          %p171 = pneg %p103
        $region22: #{tpu_custom_call.1} parent=11 // pred_check_branch
          %173 = sbr.rel (%p171) target = $region24
        $region23: #{tpu_custom_call.1} parent=11 // pred_region
          _
        $region24: #{tpu_custom_call.1} parent=11 // pred_fallthru
          _
        // Predicated region
        $region25: #{tpu_custom_call.1} parent=11 // pred_check
          %p174 = pneg %p124
        $region26: #{tpu_custom_call.1} parent=11 // pred_check_branch
          %176 = sbr.rel (%p174) target = $region28
        $region27: #{tpu_custom_call.1} parent=11 // pred_region
          _
        $region28: #{tpu_custom_call.1} parent=11 // pred_fallthru
          _
      $region12: #{tpu_custom_call.1} parent=5 // pred_fallthru
        _
      %p177 = scmp.lt.s32.totalorder %s14, 2
      // Predicated region
      $region29: #{tpu_custom_call.1} parent=5 // pred_check
        %p178 = pneg %p177
      $region30: #{tpu_custom_call.1} parent=5 // pred_check_branch
        %180 = sbr.rel (%p178) target = $region32
      $region31: #{tpu_custom_call.1} parent=5 // pred_region
        // Predicated region
        $region33: #{tpu_custom_call.1} parent=31 // pred_check
          %p181 = pneg %p34
        $region34: #{tpu_custom_call.1} parent=31 // pred_check_branch
          %183 = sbr.rel (%p181) target = $region36
        $region35: #{tpu_custom_call.1} parent=31 // pred_region
          %s184 = smul.u32 32, %s14
          %p185 = scmp.lt.s32.totalorder %s184, 63
          %s186 = scalar_select %p185, %s184, 63
          %s187 = smul.addr %s186, 8
          %s188 = scalar_lea.vmem %s0, %s187
          %s189 = smul.u32 32, %s14
        $region36: #{tpu_custom_call.1} parent=31 // pred_fallthru
          _
      $region32: #{tpu_custom_call.1} parent=5 // pred_fallthru
        _
      %p190 = scmp.le.s32.totalorder 1, %s14
      %p191 = scmp.lt.s32.totalorder %s14, 3
      %p192 = pnand %p190, %p191
      %p193 = pneg %p192
      // Predicated region
      $region37: #{tpu_custom_call.1} parent=5 // pred_check
        _
      $region38: #{tpu_custom_call.1} parent=5 // pred_check_branch
        %195 = sbr.rel (%p192) target = $region40
      $region39: #{tpu_custom_call.1} parent=5 // pred_region
        %s196 = ssub.s32 %s14, 1
        %s197 = smul.u32 32, %s19
        %p198 = scmp.lt.s32.totalorder %s197, 63
        %s199 = scalar_select %p198, %s197, 63
        %s200 = smul.addr %s199, 8
        %s201 = scalar_lea.vmem %s0, %s200
        %p202 = pneg %p40
        %p203 = pneg %p37
        %p204 = pneg %p61
        %p205 = pneg %p58
        %p206 = pneg %p82
        %p207 = pneg %p79
        %p208 = pneg %p103
        %p209 = pneg %p100
        %p210 = pneg %p124
        %p211 = pneg %p121
        %p212 = pneg %p150
        %p213 = pneg %p147
        %s214 = sand.u32 %s137, 1
        %s215 = scalar_lea.sflag [#allocation3], %s214
        %s216 = sand.u32 %s137, 1
        %s217 = smul.addr %s216, 256
        %s218 = scalar_lea.vmem [#allocation2], %s217
        %s219 = smul.u32 32, %s19
        %p220 = scmp.lt.s32.totalorder %s219, 63
        %s221 = scalar_select %p220, %s219, 63
        %s222 = smul.addr %s221, 8
        %s223 = scalar_lea.vmem %s0, %s222
        %s224 = smul.u32 32, %s19
        %s225 = smul.u32 32, %s19
        %v227 = vld [vmem:[%s223] sm:$0xff]
        %v228 = vld [vmem:[%s223 + $0x8] sm:$0xff]
        %v229 = vld [vmem:[%s223 + $0x10] sm:$0xff]
        %v230 = vld [vmem:[%s223 + $0x18] sm:$0xff]
        %v231 = vld [vmem:[%s223 + $0x20] sm:$0xff]
        %v232 = vld [vmem:[%s223 + $0x28] sm:$0xff]
        %v233 = vld [vmem:[%s223 + $0x30] sm:$0xff]
        %v234 = vld [vmem:[%s223 + $0x38] sm:$0xff]
        %v235 = vld [vmem:[%s223 + $0x40] sm:$0xff]
        %v236 = vld [vmem:[%s223 + $0x48] sm:$0xff]
        %v237 = vld [vmem:[%s223 + $0x50] sm:$0xff]
        %v238 = vld [vmem:[%s223 + $0x58] sm:$0xff]
        %v239 = vld [vmem:[%s223 + $0x60] sm:$0xff]
        %v240 = vld [vmem:[%s223 + $0x68] sm:$0xff]
        %v241 = vld [vmem:[%s223 + $0x70] sm:$0xff]
        %v242 = vld [vmem:[%s223 + $0x78] sm:$0xff]
        %v243 = vld [vmem:[%s223 + $0x80] sm:$0xff]
        %v244 = vld [vmem:[%s223 + $0x88] sm:$0xff]
        %v245 = vld [vmem:[%s223 + $0x90] sm:$0xff]
        %v246 = vld [vmem:[%s223 + $0x98] sm:$0xff]
        %v247 = vld [vmem:[%s223 + $0xa0] sm:$0xff]
        %v248 = vld [vmem:[%s223 + $0xa8] sm:$0xff]
        %v249 = vld [vmem:[%s223 + $0xb0] sm:$0xff]
        %v250 = vld [vmem:[%s223 + $0xb8] sm:$0xff]
        %v251 = vld [vmem:[%s223 + $0xc0] sm:$0xff]
        %v252 = vld [vmem:[%s223 + $0xc8] sm:$0xff]
        %v253 = vld [vmem:[%s223 + $0xd0] sm:$0xff]
        %v254 = vld [vmem:[%s223 + $0xd8] sm:$0xff]
        %v255 = vld [vmem:[%s223 + $0xe0] sm:$0xff]
        %v256 = vld [vmem:[%s223 + $0xe8] sm:$0xff]
        %v257 = vld [vmem:[%s223 + $0xf0] sm:$0xff]
        %v258 = vld [vmem:[%s223 + $0xf8] sm:$0xff]
        %v259 = vlaneseq
        %v260 = vand.u32 %v259, 127
        %v261 = vadd.s32 %v260, 128
        %v262 = vadd.s32 %v260, 256
        %263 = vset.pattern.permute.xlu0 0
        %264 = vperm.xlu0 %263, %v227
        %v265 = vpop.permute.xlu0 %264
        %266 = vset.pattern.permute.xlu0 0
        %267 = vperm.xlu0 %266, %v228
        %v268 = vpop.permute.xlu0 %267
        %269 = vset.pattern.permute.xlu0 0
        %270 = vperm.xlu0 %269, %v229
        %v271 = vpop.permute.xlu0 %270
        %272 = vset.pattern.permute.xlu0 0
        %273 = vperm.xlu0 %272, %v230
        %v274 = vpop.permute.xlu0 %273
        %275 = vset.pattern.permute.xlu0 0
        %276 = vperm.xlu0 %275, %v231
        %v277 = vpop.permute.xlu0 %276
        %278 = vset.pattern.permute.xlu0 0
        %279 = vperm.xlu0 %278, %v232
        %v280 = vpop.permute.xlu0 %279
        %281 = vset.pattern.permute.xlu0 0
        %282 = vperm.xlu0 %281, %v233
        %v283 = vpop.permute.xlu0 %282
        %284 = vset.pattern.permute.xlu0 0
        %285 = vperm.xlu0 %284, %v234
        %v286 = vpop.permute.xlu0 %285
        %287 = vset.pattern.permute.xlu0 0
        %288 = vperm.xlu0 %287, %v235
        %v289 = vpop.permute.xlu0 %288
        %290 = vset.pattern.permute.xlu0 0
        %291 = vperm.xlu0 %290, %v236
        %v292 = vpop.permute.xlu0 %291
        %293 = vset.pattern.permute.xlu0 0
        %294 = vperm.xlu0 %293, %v237
        %v295 = vpop.permute.xlu0 %294
        %296 = vset.pattern.permute.xlu0 0
        %297 = vperm.xlu0 %296, %v238
        %v298 = vpop.permute.xlu0 %297
        %299 = vset.pattern.permute.xlu0 0
        %300 = vperm.xlu0 %299, %v239
        %v301 = vpop.permute.xlu0 %300
        %302 = vset.pattern.permute.xlu0 0
        %303 = vperm.xlu0 %302, %v240
        %v304 = vpop.permute.xlu0 %303
        %305 = vset.pattern.permute.xlu0 0
        %306 = vperm.xlu0 %305, %v241
        %v307 = vpop.permute.xlu0 %306
        %308 = vset.pattern.permute.xlu0 0
        %309 = vperm.xlu0 %308, %v242
        %v310 = vpop.permute.xlu0 %309
        %311 = vset.pattern.permute.xlu0 0
        %312 = vperm.xlu0 %311, %v243
        %v313 = vpop.permute.xlu0 %312
        %314 = vset.pattern.permute.xlu0 0
        %315 = vperm.xlu0 %314, %v244
        %v316 = vpop.permute.xlu0 %315
        %317 = vset.pattern.permute.xlu0 0
        %318 = vperm.xlu0 %317, %v245
        %v319 = vpop.permute.xlu0 %318
        %320 = vset.pattern.permute.xlu0 0
        %321 = vperm.xlu0 %320, %v246
        %v322 = vpop.permute.xlu0 %321
        %323 = vset.pattern.permute.xlu0 0
        %324 = vperm.xlu0 %323, %v247
        %v325 = vpop.permute.xlu0 %324
        %326 = vset.pattern.permute.xlu0 0
        %327 = vperm.xlu0 %326, %v248
        %v328 = vpop.permute.xlu0 %327
        %329 = vset.pattern.permute.xlu0 0
        %330 = vperm.xlu0 %329, %v249
        %v331 = vpop.permute.xlu0 %330
        %332 = vset.pattern.permute.xlu0 0
        %333 = vperm.xlu0 %332, %v250
        %v334 = vpop.permute.xlu0 %333
        %335 = vset.pattern.permute.xlu0 0
        %336 = vperm.xlu0 %335, %v251
        %v337 = vpop.permute.xlu0 %336
        %338 = vset.pattern.permute.xlu0 0
        %339 = vperm.xlu0 %338, %v252
        %v340 = vpop.permute.xlu0 %339
        %341 = vset.pattern.permute.xlu0 0
        %342 = vperm.xlu0 %341, %v253
        %v343 = vpop.permute.xlu0 %342
        %344 = vset.pattern.permute.xlu0 0
        %345 = vperm.xlu0 %344, %v254
        %v346 = vpop.permute.xlu0 %345
        %347 = vset.pattern.permute.xlu0 0
        %348 = vperm.xlu0 %347, %v255
        %v349 = vpop.permute.xlu0 %348
        %350 = vset.pattern.permute.xlu0 0
        %351 = vperm.xlu0 %350, %v256
        %v352 = vpop.permute.xlu0 %351
        %353 = vset.pattern.permute.xlu0 0
        %354 = vperm.xlu0 %353, %v257
        %v355 = vpop.permute.xlu0 %354
        %356 = vset.pattern.permute.xlu0 0
        %357 = vperm.xlu0 %356, %v258
        %v358 = vpop.permute.xlu0 %357
        %vm359 = vcmp.eq.s32.totalorder %v260, %v265
        %vm360 = vcmp.eq.s32.totalorder %v261, %v265
        %vm361 = vcmp.eq.s32.totalorder %v262, %v265
        %vm362 = vcmp.eq.s32.totalorder %v260, %v268
        %vm363 = vcmp.eq.s32.totalorder %v261, %v268
        %vm364 = vcmp.eq.s32.totalorder %v262, %v268
        %vm365 = vcmp.eq.s32.totalorder %v260, %v271
        %vm366 = vcmp.eq.s32.totalorder %v261, %v271
        %vm367 = vcmp.eq.s32.totalorder %v262, %v271
        %vm368 = vcmp.eq.s32.totalorder %v260, %v274
        %vm369 = vcmp.eq.s32.totalorder %v261, %v274
        %vm370 = vcmp.eq.s32.totalorder %v262, %v274
        %vm371 = vcmp.eq.s32.totalorder %v260, %v277
        %vm372 = vcmp.eq.s32.totalorder %v261, %v277
        %vm373 = vcmp.eq.s32.totalorder %v262, %v277
        %vm374 = vcmp.eq.s32.totalorder %v260, %v280
        %vm375 = vcmp.eq.s32.totalorder %v261, %v280
        %vm376 = vcmp.eq.s32.totalorder %v262, %v280
        %vm377 = vcmp.eq.s32.totalorder %v260, %v283
        %vm378 = vcmp.eq.s32.totalorder %v261, %v283
        %vm379 = vcmp.eq.s32.totalorder %v262, %v283
        %vm380 = vcmp.eq.s32.totalorder %v260, %v286
        %vm381 = vcmp.eq.s32.totalorder %v261, %v286
        %vm382 = vcmp.eq.s32.totalorder %v262, %v286
        %vm383 = vcmp.eq.s32.totalorder %v260, %v289
        %vm384 = vcmp.eq.s32.totalorder %v261, %v289
        %vm385 = vcmp.eq.s32.totalorder %v262, %v289
        %vm386 = vcmp.eq.s32.totalorder %v260, %v292
        %vm387 = vcmp.eq.s32.totalorder %v261, %v292
        %vm388 = vcmp.eq.s32.totalorder %v262, %v292
        %vm389 = vcmp.eq.s32.totalorder %v260, %v295
        %vm390 = vcmp.eq.s32.totalorder %v261, %v295
        %vm391 = vcmp.eq.s32.totalorder %v262, %v295
        %vm392 = vcmp.eq.s32.totalorder %v260, %v298
        %vm393 = vcmp.eq.s32.totalorder %v261, %v298
        %vm394 = vcmp.eq.s32.totalorder %v262, %v298
        %vm395 = vcmp.eq.s32.totalorder %v260, %v301
        %vm396 = vcmp.eq.s32.totalorder %v261, %v301
        %vm397 = vcmp.eq.s32.totalorder %v262, %v301
        %vm398 = vcmp.eq.s32.totalorder %v260, %v304
        %vm399 = vcmp.eq.s32.totalorder %v261, %v304
        %vm400 = vcmp.eq.s32.totalorder %v262, %v304
        %vm401 = vcmp.eq.s32.totalorder %v260, %v307
        %vm402 = vcmp.eq.s32.totalorder %v261, %v307
        %vm403 = vcmp.eq.s32.totalorder %v262, %v307
        %vm404 = vcmp.eq.s32.totalorder %v260, %v310
        %vm405 = vcmp.eq.s32.totalorder %v261, %v310
        %vm406 = vcmp.eq.s32.totalorder %v262, %v310
        %vm407 = vcmp.eq.s32.totalorder %v260, %v313
        %vm408 = vcmp.eq.s32.totalorder %v261, %v313
        %vm409 = vcmp.eq.s32.totalorder %v262, %v313
        %vm410 = vcmp.eq.s32.totalorder %v260, %v316
        %vm411 = vcmp.eq.s32.totalorder %v261, %v316
        %vm412 = vcmp.eq.s32.totalorder %v262, %v316
        %vm413 = vcmp.eq.s32.totalorder %v260, %v319
        %vm414 = vcmp.eq.s32.totalorder %v261, %v319
        %vm415 = vcmp.eq.s32.totalorder %v262, %v319
        %vm416 = vcmp.eq.s32.totalorder %v260, %v322
        %vm417 = vcmp.eq.s32.totalorder %v261, %v322
        %vm418 = vcmp.eq.s32.totalorder %v262, %v322
        %vm419 = vcmp.eq.s32.totalorder %v260, %v325
        %vm420 = vcmp.eq.s32.totalorder %v261, %v325
        %vm421 = vcmp.eq.s32.totalorder %v262, %v325
        %vm422 = vcmp.eq.s32.totalorder %v260, %v328
        %vm423 = vcmp.eq.s32.totalorder %v261, %v328
        %vm424 = vcmp.eq.s32.totalorder %v262, %v328
        %vm425 = vcmp.eq.s32.totalorder %v260, %v331
        %vm426 = vcmp.eq.s32.totalorder %v261, %v331
        %vm427 = vcmp.eq.s32.totalorder %v262, %v331
        %vm428 = vcmp.eq.s32.totalorder %v260, %v334
        %vm429 = vcmp.eq.s32.totalorder %v261, %v334
        %vm430 = vcmp.eq.s32.totalorder %v262, %v334
        %vm431 = vcmp.eq.s32.totalorder %v260, %v337
        %vm432 = vcmp.eq.s32.totalorder %v261, %v337
        %vm433 = vcmp.eq.s32.totalorder %v262, %v337
        %vm434 = vcmp.eq.s32.totalorder %v260, %v340
        %vm435 = vcmp.eq.s32.totalorder %v261, %v340
        %vm436 = vcmp.eq.s32.totalorder %v262, %v340
        %vm437 = vcmp.eq.s32.totalorder %v260, %v343
        %vm438 = vcmp.eq.s32.totalorder %v261, %v343
        %vm439 = vcmp.eq.s32.totalorder %v262, %v343
        %vm440 = vcmp.eq.s32.totalorder %v260, %v346
        %vm441 = vcmp.eq.s32.totalorder %v261, %v346
        %vm442 = vcmp.eq.s32.totalorder %v262, %v346
        %vm443 = vcmp.eq.s32.totalorder %v260, %v349
        %vm444 = vcmp.eq.s32.totalorder %v261, %v349
        %vm445 = vcmp.eq.s32.totalorder %v262, %v349
        %vm446 = vcmp.eq.s32.totalorder %v260, %v352
        %vm447 = vcmp.eq.s32.totalorder %v261, %v352
        %vm448 = vcmp.eq.s32.totalorder %v262, %v352
        %vm449 = vcmp.eq.s32.totalorder %v260, %v355
        %vm450 = vcmp.eq.s32.totalorder %v261, %v355
        %vm451 = vcmp.eq.s32.totalorder %v262, %v355
        %vm452 = vcmp.eq.s32.totalorder %v260, %v358
        %vm453 = vcmp.eq.s32.totalorder %v261, %v358
        %vm454 = vcmp.eq.s32.totalorder %v262, %v358
        %v455 = vadd.s32 %v227, 128
        %v456 = vadd.s32 %v228, 128
        %v457 = vadd.s32 %v229, 128
        %v458 = vadd.s32 %v230, 128
        %v459 = vadd.s32 %v231, 128
        %v460 = vadd.s32 %v232, 128
        %v461 = vadd.s32 %v233, 128
        %v462 = vadd.s32 %v234, 128
        %v463 = vadd.s32 %v235, 128
        %v464 = vadd.s32 %v236, 128
        %v465 = vadd.s32 %v237, 128
        %v466 = vadd.s32 %v238, 128
        %v467 = vadd.s32 %v239, 128
        %v468 = vadd.s32 %v240, 128
        %v469 = vadd.s32 %v241, 128
        %v470 = vadd.s32 %v242, 128
        %v471 = vadd.s32 %v243, 128
        %v472 = vadd.s32 %v244, 128
        %v473 = vadd.s32 %v245, 128
        %v474 = vadd.s32 %v246, 128
        %v475 = vadd.s32 %v247, 128
        %v476 = vadd.s32 %v248, 128
        %v477 = vadd.s32 %v249, 128
        %v478 = vadd.s32 %v250, 128
        %v479 = vadd.s32 %v251, 128
        %v480 = vadd.s32 %v252, 128
        %v481 = vadd.s32 %v253, 128
        %v482 = vadd.s32 %v254, 128
        %v483 = vadd.s32 %v255, 128
        %v484 = vadd.s32 %v256, 128
        %v485 = vadd.s32 %v257, 128
        %v486 = vadd.s32 %v258, 128
        %487 = vset.pattern.permute.xlu0 1
        %488 = vperm.xlu0 %487, %v455
        %v489 = vpop.permute.xlu0 %488
        %490 = vset.pattern.permute.xlu0 1
        %491 = vperm.xlu0 %490, %v456
        %v492 = vpop.permute.xlu0 %491
        %493 = vset.pattern.permute.xlu0 1
        %494 = vperm.xlu0 %493, %v457
        %v495 = vpop.permute.xlu0 %494
        %496 = vset.pattern.permute.xlu0 1
        %497 = vperm.xlu0 %496, %v458
        %v498 = vpop.permute.xlu0 %497
        %499 = vset.pattern.permute.xlu0 1
        %500 = vperm.xlu0 %499, %v459
        %v501 = vpop.permute.xlu0 %500
        %502 = vset.pattern.permute.xlu0 1
        %503 = vperm.xlu0 %502, %v460
        %v504 = vpop.permute.xlu0 %503
        %505 = vset.pattern.permute.xlu0 1
        %506 = vperm.xlu0 %505, %v461
        %v507 = vpop.permute.xlu0 %506
        %508 = vset.pattern.permute.xlu0 1
        %509 = vperm.xlu0 %508, %v462
        %v510 = vpop.permute.xlu0 %509
        %511 = vset.pattern.permute.xlu0 1
        %512 = vperm.xlu0 %511, %v463
        %v513 = vpop.permute.xlu0 %512
        %514 = vset.pattern.permute.xlu0 1
        %515 = vperm.xlu0 %514, %v464
        %v516 = vpop.permute.xlu0 %515
        %517 = vset.pattern.permute.xlu0 1
        %518 = vperm.xlu0 %517, %v465
        %v519 = vpop.permute.xlu0 %518
        %520 = vset.pattern.permute.xlu0 1
        %521 = vperm.xlu0 %520, %v466
        %v522 = vpop.permute.xlu0 %521
        %523 = vset.pattern.permute.xlu0 1
        %524 = vperm.xlu0 %523, %v467
        %v525 = vpop.permute.xlu0 %524
        %526 = vset.pattern.permute.xlu0 1
        %527 = vperm.xlu0 %526, %v468
        %v528 = vpop.permute.xlu0 %527
        %529 = vset.pattern.permute.xlu0 1
        %530 = vperm.xlu0 %529, %v469
        %v531 = vpop.permute.xlu0 %530
        %532 = vset.pattern.permute.xlu0 1
        %533 = vperm.xlu0 %532, %v470
        %v534 = vpop.permute.xlu0 %533
        %535 = vset.pattern.permute.xlu0 1
        %536 = vperm.xlu0 %535, %v471
        %v537 = vpop.permute.xlu0 %536
        %538 = vset.pattern.permute.xlu0 1
        %539 = vperm.xlu0 %538, %v472
        %v540 = vpop.permute.xlu0 %539
        %541 = vset.pattern.permute.xlu0 1
        %542 = vperm.xlu0 %541, %v473
        %v543 = vpop.permute.xlu0 %542
        %544 = vset.pattern.permute.xlu0 1
        %545 = vperm.xlu0 %544, %v474
        %v546 = vpop.permute.xlu0 %545
        %547 = vset.pattern.permute.xlu0 1
        %548 = vperm.xlu0 %547, %v475
        %v549 = vpop.permute.xlu0 %548
        %550 = vset.pattern.permute.xlu0 1
        %551 = vperm.xlu0 %550, %v476
        %v552 = vpop.permute.xlu0 %551
        %553 = vset.pattern.permute.xlu0 1
        %554 = vperm.xlu0 %553, %v477
        %v555 = vpop.permute.xlu0 %554
        %556 = vset.pattern.permute.xlu0 1
        %557 = vperm.xlu0 %556, %v478
        %v558 = vpop.permute.xlu0 %557
        %559 = vset.pattern.permute.xlu0 1
        %560 = vperm.xlu0 %559, %v479
        %v561 = vpop.permute.xlu0 %560
        %562 = vset.pattern.permute.xlu0 1
        %563 = vperm.xlu0 %562, %v480
        %v564 = vpop.permute.xlu0 %563
        %565 = vset.pattern.permute.xlu0 1
        %566 = vperm.xlu0 %565, %v481
        %v567 = vpop.permute.xlu0 %566
        %568 = vset.pattern.permute.xlu0 1
        %569 = vperm.xlu0 %568, %v482
        %v570 = vpop.permute.xlu0 %569
        %571 = vset.pattern.permute.xlu0 1
        %572 = vperm.xlu0 %571, %v483
        %v573 = vpop.permute.xlu0 %572
        %574 = vset.pattern.permute.xlu0 1
        %575 = vperm.xlu0 %574, %v484
        %v576 = vpop.permute.xlu0 %575
        %577 = vset.pattern.permute.xlu0 1
        %578 = vperm.xlu0 %577, %v485
        %v579 = vpop.permute.xlu0 %578
        %580 = vset.pattern.permute.xlu0 1
        %581 = vperm.xlu0 %580, %v486
        %v582 = vpop.permute.xlu0 %581
        %vm583 = vcmp.eq.s32.totalorder %v260, %v489
        %vm584 = vcmp.eq.s32.totalorder %v261, %v489
        %vm585 = vcmp.eq.s32.totalorder %v262, %v489
        %vm586 = vcmp.eq.s32.totalorder %v260, %v492
        %vm587 = vcmp.eq.s32.totalorder %v261, %v492
        %vm588 = vcmp.eq.s32.totalorder %v262, %v492
        %vm589 = vcmp.eq.s32.totalorder %v260, %v495
        %vm590 = vcmp.eq.s32.totalorder %v261, %v495
        %vm591 = vcmp.eq.s32.totalorder %v262, %v495
        %vm592 = vcmp.eq.s32.totalorder %v260, %v498
        %vm593 = vcmp.eq.s32.totalorder %v261, %v498
        %vm594 = vcmp.eq.s32.totalorder %v262, %v498
        %vm595 = vcmp.eq.s32.totalorder %v260, %v501
        %vm596 = vcmp.eq.s32.totalorder %v261, %v501
        %vm597 = vcmp.eq.s32.totalorder %v262, %v501
        %vm598 = vcmp.eq.s32.totalorder %v260, %v504
        %vm599 = vcmp.eq.s32.totalorder %v261, %v504
        %vm600 = vcmp.eq.s32.totalorder %v262, %v504
        %vm601 = vcmp.eq.s32.totalorder %v260, %v507
        %vm602 = vcmp.eq.s32.totalorder %v261, %v507
        %vm603 = vcmp.eq.s32.totalorder %v262, %v507
        %vm604 = vcmp.eq.s32.totalorder %v260, %v510
        %vm605 = vcmp.eq.s32.totalorder %v261, %v510
        %vm606 = vcmp.eq.s32.totalorder %v262, %v510
        %vm607 = vcmp.eq.s32.totalorder %v260, %v513
        %vm608 = vcmp.eq.s32.totalorder %v261, %v513
        %vm609 = vcmp.eq.s32.totalorder %v262, %v513
        %vm610 = vcmp.eq.s32.totalorder %v260, %v516
        %vm611 = vcmp.eq.s32.totalorder %v261, %v516
        %vm612 = vcmp.eq.s32.totalorder %v262, %v516
        %vm613 = vcmp.eq.s32.totalorder %v260, %v519
        %vm614 = vcmp.eq.s32.totalorder %v261, %v519
        %vm615 = vcmp.eq.s32.totalorder %v262, %v519
        %vm616 = vcmp.eq.s32.totalorder %v260, %v522
        %vm617 = vcmp.eq.s32.totalorder %v261, %v522
        %vm618 = vcmp.eq.s32.totalorder %v262, %v522
        %vm619 = vcmp.eq.s32.totalorder %v260, %v525
        %vm620 = vcmp.eq.s32.totalorder %v261, %v525
        %vm621 = vcmp.eq.s32.totalorder %v262, %v525
        %vm622 = vcmp.eq.s32.totalorder %v260, %v528
        %vm623 = vcmp.eq.s32.totalorder %v261, %v528
        %vm624 = vcmp.eq.s32.totalorder %v262, %v528
        %vm625 = vcmp.eq.s32.totalorder %v260, %v531
        %vm626 = vcmp.eq.s32.totalorder %v261, %v531
        %vm627 = vcmp.eq.s32.totalorder %v262, %v531
        %vm628 = vcmp.eq.s32.totalorder %v260, %v534
        %vm629 = vcmp.eq.s32.totalorder %v261, %v534
        %vm630 = vcmp.eq.s32.totalorder %v262, %v534
        %vm631 = vcmp.eq.s32.totalorder %v260, %v537
        %vm632 = vcmp.eq.s32.totalorder %v261, %v537
        %vm633 = vcmp.eq.s32.totalorder %v262, %v537
        %vm634 = vcmp.eq.s32.totalorder %v260, %v540
        %vm635 = vcmp.eq.s32.totalorder %v261, %v540
        %vm636 = vcmp.eq.s32.totalorder %v262, %v540
        %vm637 = vcmp.eq.s32.totalorder %v260, %v543
        %vm638 = vcmp.eq.s32.totalorder %v261, %v543
        %vm639 = vcmp.eq.s32.totalorder %v262, %v543
        %vm640 = vcmp.eq.s32.totalorder %v260, %v546
        %vm641 = vcmp.eq.s32.totalorder %v261, %v546
        %vm642 = vcmp.eq.s32.totalorder %v262, %v546
        %vm643 = vcmp.eq.s32.totalorder %v260, %v549
        %vm644 = vcmp.eq.s32.totalorder %v261, %v549
        %vm645 = vcmp.eq.s32.totalorder %v262, %v549
        %vm646 = vcmp.eq.s32.totalorder %v260, %v552
        %vm647 = vcmp.eq.s32.totalorder %v261, %v552
        %vm648 = vcmp.eq.s32.totalorder %v262, %v552
        %vm649 = vcmp.eq.s32.totalorder %v260, %v555
        %vm650 = vcmp.eq.s32.totalorder %v261, %v555
        %vm651 = vcmp.eq.s32.totalorder %v262, %v555
        %vm652 = vcmp.eq.s32.totalorder %v260, %v558
        %vm653 = vcmp.eq.s32.totalorder %v261, %v558
        %vm654 = vcmp.eq.s32.totalorder %v262, %v558
        %vm655 = vcmp.eq.s32.totalorder %v260, %v561
        %vm656 = vcmp.eq.s32.totalorder %v261, %v561
        %vm657 = vcmp.eq.s32.totalorder %v262, %v561
        %vm658 = vcmp.eq.s32.totalorder %v260, %v564
        %vm659 = vcmp.eq.s32.totalorder %v261, %v564
        %vm660 = vcmp.eq.s32.totalorder %v262, %v564
        %vm661 = vcmp.eq.s32.totalorder %v260, %v567
        %vm662 = vcmp.eq.s32.totalorder %v261, %v567
        %vm663 = vcmp.eq.s32.totalorder %v262, %v567
        %vm664 = vcmp.eq.s32.totalorder %v260, %v570
        %vm665 = vcmp.eq.s32.totalorder %v261, %v570
        %vm666 = vcmp.eq.s32.totalorder %v262, %v570
        %vm667 = vcmp.eq.s32.totalorder %v260, %v573
        %vm668 = vcmp.eq.s32.totalorder %v261, %v573
        %vm669 = vcmp.eq.s32.totalorder %v262, %v573
        %vm670 = vcmp.eq.s32.totalorder %v260, %v576
        %vm671 = vcmp.eq.s32.totalorder %v261, %v576
        %vm672 = vcmp.eq.s32.totalorder %v262, %v576
        %vm673 = vcmp.eq.s32.totalorder %v260, %v579
        %vm674 = vcmp.eq.s32.totalorder %v261, %v579
        %vm675 = vcmp.eq.s32.totalorder %v262, %v579
        %vm676 = vcmp.eq.s32.totalorder %v260, %v582
        %vm677 = vcmp.eq.s32.totalorder %v261, %v582
        %vm678 = vcmp.eq.s32.totalorder %v262, %v582
        %vm679 = vmor %vm359, %vm583
        %vm680 = vmor %vm360, %vm584
        %vm681 = vmor %vm361, %vm585
        %vm682 = vmor %vm362, %vm586
        %vm683 = vmor %vm363, %vm587
        %vm684 = vmor %vm364, %vm588
        %vm685 = vmor %vm365, %vm589
        %vm686 = vmor %vm366, %vm590
        %vm687 = vmor %vm367, %vm591
        %vm688 = vmor %vm368, %vm592
        %vm689 = vmor %vm369, %vm593
        %vm690 = vmor %vm370, %vm594
        %vm691 = vmor %vm371, %vm595
        %vm692 = vmor %vm372, %vm596
        %vm693 = vmor %vm373, %vm597
        %vm694 = vmor %vm374, %vm598
        %vm695 = vmor %vm375, %vm599
        %vm696 = vmor %vm376, %vm600
        %vm697 = vmor %vm377, %vm601
        %vm698 = vmor %vm378, %vm602
        %vm699 = vmor %vm379, %vm603
        %vm700 = vmor %vm380, %vm604
        %vm701 = vmor %vm381, %vm605
        %vm702 = vmor %vm382, %vm606
        %vm703 = vmor %vm383, %vm607
        %vm704 = vmor %vm384, %vm608
        %vm705 = vmor %vm385, %vm609
        %vm706 = vmor %vm386, %vm610
        %vm707 = vmor %vm387, %vm611
        %vm708 = vmor %vm388, %vm612
        %vm709 = vmor %vm389, %vm613
        %vm710 = vmor %vm390, %vm614
        %vm711 = vmor %vm391, %vm615
        %vm712 = vmor %vm392, %vm616
        %vm713 = vmor %vm393, %vm617
        %vm714 = vmor %vm394, %vm618
        %vm715 = vmor %vm395, %vm619
        %vm716 = vmor %vm396, %vm620
        %vm717 = vmor %vm397, %vm621
        %vm718 = vmor %vm398, %vm622
        %vm719 = vmor %vm399, %vm623
        %vm720 = vmor %vm400, %vm624
        %vm721 = vmor %vm401, %vm625
        %vm722 = vmor %vm402, %vm626
        %vm723 = vmor %vm403, %vm627
        %vm724 = vmor %vm404, %vm628
        %vm725 = vmor %vm405, %vm629
        %vm726 = vmor %vm406, %vm630
        %vm727 = vmor %vm407, %vm631
        %vm728 = vmor %vm408, %vm632
        %vm729 = vmor %vm409, %vm633
        %vm730 = vmor %vm410, %vm634
        %vm731 = vmor %vm411, %vm635
        %vm732 = vmor %vm412, %vm636
        %vm733 = vmor %vm413, %vm637
        %vm734 = vmor %vm414, %vm638
        %vm735 = vmor %vm415, %vm639
        %vm736 = vmor %vm416, %vm640
        %vm737 = vmor %vm417, %vm641
        %vm738 = vmor %vm418, %vm642
        %vm739 = vmor %vm419, %vm643
        %vm740 = vmor %vm420, %vm644
        %vm741 = vmor %vm421, %vm645
        %vm742 = vmor %vm422, %vm646
        %vm743 = vmor %vm423, %vm647
        %vm744 = vmor %vm424, %vm648
        %vm745 = vmor %vm425, %vm649
        %vm746 = vmor %vm426, %vm650
        %vm747 = vmor %vm427, %vm651
        %vm748 = vmor %vm428, %vm652
        %vm749 = vmor %vm429, %vm653
        %vm750 = vmor %vm430, %vm654
        %vm751 = vmor %vm431, %vm655
        %vm752 = vmor %vm432, %vm656
        %vm753 = vmor %vm433, %vm657
        %vm754 = vmor %vm434, %vm658
        %vm755 = vmor %vm435, %vm659
        %vm756 = vmor %vm436, %vm660
        %vm757 = vmor %vm437, %vm661
        %vm758 = vmor %vm438, %vm662
        %vm759 = vmor %vm439, %vm663
        %vm760 = vmor %vm440, %vm664
        %vm761 = vmor %vm441, %vm665
        %vm762 = vmor %vm442, %vm666
        %vm763 = vmor %vm443, %vm667
        %vm764 = vmor %vm444, %vm668
        %vm765 = vmor %vm445, %vm669
        %vm766 = vmor %vm446, %vm670
        %vm767 = vmor %vm447, %vm671
        %vm768 = vmor %vm448, %vm672
        %vm769 = vmor %vm449, %vm673
        %vm770 = vmor %vm450, %vm674
        %vm771 = vmor %vm451, %vm675
        %vm772 = vmor %vm452, %vm676
        %vm773 = vmor %vm453, %vm677
        %vm774 = vmor %vm454, %vm678
        %v775 = vadd.s32 %v227, 256
        %v776 = vadd.s32 %v228, 256
        %v777 = vadd.s32 %v229, 256
        %v778 = vadd.s32 %v230, 256
        %v779 = vadd.s32 %v231, 256
        %v780 = vadd.s32 %v232, 256
        %v781 = vadd.s32 %v233, 256
        %v782 = vadd.s32 %v234, 256
        %v783 = vadd.s32 %v235, 256
        %v784 = vadd.s32 %v236, 256
        %v785 = vadd.s32 %v237, 256
        %v786 = vadd.s32 %v238, 256
        %v787 = vadd.s32 %v239, 256
        %v788 = vadd.s32 %v240, 256
        %v789 = vadd.s32 %v241, 256
        %v790 = vadd.s32 %v242, 256
        %v791 = vadd.s32 %v243, 256
        %v792 = vadd.s32 %v244, 256
        %v793 = vadd.s32 %v245, 256
        %v794 = vadd.s32 %v246, 256
        %v795 = vadd.s32 %v247, 256
        %v796 = vadd.s32 %v248, 256
        %v797 = vadd.s32 %v249, 256
        %v798 = vadd.s32 %v250, 256
        %v799 = vadd.s32 %v251, 256
        %v800 = vadd.s32 %v252, 256
        %v801 = vadd.s32 %v253, 256
        %v802 = vadd.s32 %v254, 256
        %v803 = vadd.s32 %v255, 256
        %v804 = vadd.s32 %v256, 256
        %v805 = vadd.s32 %v257, 256
        %v806 = vadd.s32 %v258, 256
        %807 = vset.pattern.permute.xlu0 2
        %808 = vperm.xlu0 %807, %v775
        %v809 = vpop.permute.xlu0 %808
        %810 = vset.pattern.permute.xlu0 2
        %811 = vperm.xlu0 %810, %v776
        %v812 = vpop.permute.xlu0 %811
        %813 = vset.pattern.permute.xlu0 2
        %814 = vperm.xlu0 %813, %v777
        %v815 = vpop.permute.xlu0 %814
        %816 = vset.pattern.permute.xlu0 2
        %817 = vperm.xlu0 %816, %v778
        %v818 = vpop.permute.xlu0 %817
        %819 = vset.pattern.permute.xlu0 2
        %820 = vperm.xlu0 %819, %v779
        %v821 = vpop.permute.xlu0 %820
        %822 = vset.pattern.permute.xlu0 2
        %823 = vperm.xlu0 %822, %v780
        %v824 = vpop.permute.xlu0 %823
        %825 = vset.pattern.permute.xlu0 2
        %826 = vperm.xlu0 %825, %v781
        %v827 = vpop.permute.xlu0 %826
        %828 = vset.pattern.permute.xlu0 2
        %829 = vperm.xlu0 %828, %v782
        %v830 = vpop.permute.xlu0 %829
        %831 = vset.pattern.permute.xlu0 2
        %832 = vperm.xlu0 %831, %v783
        %v833 = vpop.permute.xlu0 %832
        %834 = vset.pattern.permute.xlu0 2
        %835 = vperm.xlu0 %834, %v784
        %v836 = vpop.permute.xlu0 %835
        %837 = vset.pattern.permute.xlu0 2
        %838 = vperm.xlu0 %837, %v785
        %v839 = vpop.permute.xlu0 %838
        %840 = vset.pattern.permute.xlu0 2
        %841 = vperm.xlu0 %840, %v786
        %v842 = vpop.permute.xlu0 %841
        %843 = vset.pattern.permute.xlu0 2
        %844 = vperm.xlu0 %843, %v787
        %v845 = vpop.permute.xlu0 %844
        %846 = vset.pattern.permute.xlu0 2
        %847 = vperm.xlu0 %846, %v788
        %v848 = vpop.permute.xlu0 %847
        %849 = vset.pattern.permute.xlu0 2
        %850 = vperm.xlu0 %849, %v789
        %v851 = vpop.permute.xlu0 %850
        %852 = vset.pattern.permute.xlu0 2
        %853 = vperm.xlu0 %852, %v790
        %v854 = vpop.permute.xlu0 %853
        %855 = vset.pattern.permute.xlu0 2
        %856 = vperm.xlu0 %855, %v791
        %v857 = vpop.permute.xlu0 %856
        %858 = vset.pattern.permute.xlu0 2
        %859 = vperm.xlu0 %858, %v792
        %v860 = vpop.permute.xlu0 %859
        %861 = vset.pattern.permute.xlu0 2
        %862 = vperm.xlu0 %861, %v793
        %v863 = vpop.permute.xlu0 %862
        %864 = vset.pattern.permute.xlu0 2
        %865 = vperm.xlu0 %864, %v794
        %v866 = vpop.permute.xlu0 %865
        %867 = vset.pattern.permute.xlu0 2
        %868 = vperm.xlu0 %867, %v795
        %v869 = vpop.permute.xlu0 %868
        %870 = vset.pattern.permute.xlu0 2
        %871 = vperm.xlu0 %870, %v796
        %v872 = vpop.permute.xlu0 %871
        %873 = vset.pattern.permute.xlu0 2
        %874 = vperm.xlu0 %873, %v797
        %v875 = vpop.permute.xlu0 %874
        %876 = vset.pattern.permute.xlu0 2
        %877 = vperm.xlu0 %876, %v798
        %v878 = vpop.permute.xlu0 %877
        %879 = vset.pattern.permute.xlu0 2
        %880 = vperm.xlu0 %879, %v799
        %v881 = vpop.permute.xlu0 %880
        %882 = vset.pattern.permute.xlu0 2
        %883 = vperm.xlu0 %882, %v800
        %v884 = vpop.permute.xlu0 %883
        %885 = vset.pattern.permute.xlu0 2
        %886 = vperm.xlu0 %885, %v801
        %v887 = vpop.permute.xlu0 %886
        %888 = vset.pattern.permute.xlu0 2
        %889 = vperm.xlu0 %888, %v802
        %v890 = vpop.permute.xlu0 %889
        %891 = vset.pattern.permute.xlu0 2
        %892 = vperm.xlu0 %891, %v803
        %v893 = vpop.permute.xlu0 %892
        %894 = vset.pattern.permute.xlu0 2
        %895 = vperm.xlu0 %894, %v804
        %v896 = vpop.permute.xlu0 %895
        %897 = vset.pattern.permute.xlu0 2
        %898 = vperm.xlu0 %897, %v805
        %v899 = vpop.permute.xlu0 %898
        %900 = vset.pattern.permute.xlu0 2
        %901 = vperm.xlu0 %900, %v806
        %v902 = vpop.permute.xlu0 %901
        %vm903 = vcmp.eq.s32.totalorder %v260, %v809
        %vm904 = vcmp.eq.s32.totalorder %v261, %v809
        %vm905 = vcmp.eq.s32.totalorder %v262, %v809
        %vm906 = vcmp.eq.s32.totalorder %v260, %v812
        %vm907 = vcmp.eq.s32.totalorder %v261, %v812
        %vm908 = vcmp.eq.s32.totalorder %v262, %v812
        %vm909 = vcmp.eq.s32.totalorder %v260, %v815
        %vm910 = vcmp.eq.s32.totalorder %v261, %v815
        %vm911 = vcmp.eq.s32.totalorder %v262, %v815
        %vm912 = vcmp.eq.s32.totalorder %v260, %v818
        %vm913 = vcmp.eq.s32.totalorder %v261, %v818
        %vm914 = vcmp.eq.s32.totalorder %v262, %v818
        %vm915 = vcmp.eq.s32.totalorder %v260, %v821
        %vm916 = vcmp.eq.s32.totalorder %v261, %v821
        %vm917 = vcmp.eq.s32.totalorder %v262, %v821
        %vm918 = vcmp.eq.s32.totalorder %v260, %v824
        %vm919 = vcmp.eq.s32.totalorder %v261, %v824
        %vm920 = vcmp.eq.s32.totalorder %v262, %v824
        %vm921 = vcmp.eq.s32.totalorder %v260, %v827
        %vm922 = vcmp.eq.s32.totalorder %v261, %v827
        %vm923 = vcmp.eq.s32.totalorder %v262, %v827
        %vm924 = vcmp.eq.s32.totalorder %v260, %v830
        %vm925 = vcmp.eq.s32.totalorder %v261, %v830
        %vm926 = vcmp.eq.s32.totalorder %v262, %v830
        %vm927 = vcmp.eq.s32.totalorder %v260, %v833
        %vm928 = vcmp.eq.s32.totalorder %v261, %v833
        %vm929 = vcmp.eq.s32.totalorder %v262, %v833
        %vm930 = vcmp.eq.s32.totalorder %v260, %v836
        %vm931 = vcmp.eq.s32.totalorder %v261, %v836
        %vm932 = vcmp.eq.s32.totalorder %v262, %v836
        %vm933 = vcmp.eq.s32.totalorder %v260, %v839
        %vm934 = vcmp.eq.s32.totalorder %v261, %v839
        %vm935 = vcmp.eq.s32.totalorder %v262, %v839
        %vm936 = vcmp.eq.s32.totalorder %v260, %v842
        %vm937 = vcmp.eq.s32.totalorder %v261, %v842
        %vm938 = vcmp.eq.s32.totalorder %v262, %v842
        %vm939 = vcmp.eq.s32.totalorder %v260, %v845
        %vm940 = vcmp.eq.s32.totalorder %v261, %v845
        %vm941 = vcmp.eq.s32.totalorder %v262, %v845
        %vm942 = vcmp.eq.s32.totalorder %v260, %v848
        %vm943 = vcmp.eq.s32.totalorder %v261, %v848
        %vm944 = vcmp.eq.s32.totalorder %v262, %v848
        %vm945 = vcmp.eq.s32.totalorder %v260, %v851
        %vm946 = vcmp.eq.s32.totalorder %v261, %v851
        %vm947 = vcmp.eq.s32.totalorder %v262, %v851
        %vm948 = vcmp.eq.s32.totalorder %v260, %v854
        %vm949 = vcmp.eq.s32.totalorder %v261, %v854
        %vm950 = vcmp.eq.s32.totalorder %v262, %v854
        %vm951 = vcmp.eq.s32.totalorder %v260, %v857
        %vm952 = vcmp.eq.s32.totalorder %v261, %v857
        %vm953 = vcmp.eq.s32.totalorder %v262, %v857
        %vm954 = vcmp.eq.s32.totalorder %v260, %v860
        %vm955 = vcmp.eq.s32.totalorder %v261, %v860
        %vm956 = vcmp.eq.s32.totalorder %v262, %v860
        %vm957 = vcmp.eq.s32.totalorder %v260, %v863
        %vm958 = vcmp.eq.s32.totalorder %v261, %v863
        %vm959 = vcmp.eq.s32.totalorder %v262, %v863
        %vm960 = vcmp.eq.s32.totalorder %v260, %v866
        %vm961 = vcmp.eq.s32.totalorder %v261, %v866
        %vm962 = vcmp.eq.s32.totalorder %v262, %v866
        %vm963 = vcmp.eq.s32.totalorder %v260, %v869
        %vm964 = vcmp.eq.s32.totalorder %v261, %v869
        %vm965 = vcmp.eq.s32.totalorder %v262, %v869
        %vm966 = vcmp.eq.s32.totalorder %v260, %v872
        %vm967 = vcmp.eq.s32.totalorder %v261, %v872
        %vm968 = vcmp.eq.s32.totalorder %v262, %v872
        %vm969 = vcmp.eq.s32.totalorder %v260, %v875
        %vm970 = vcmp.eq.s32.totalorder %v261, %v875
        %vm971 = vcmp.eq.s32.totalorder %v262, %v875
        %vm972 = vcmp.eq.s32.totalorder %v260, %v878
        %vm973 = vcmp.eq.s32.totalorder %v261, %v878
        %vm974 = vcmp.eq.s32.totalorder %v262, %v878
        %vm975 = vcmp.eq.s32.totalorder %v260, %v881
        %vm976 = vcmp.eq.s32.totalorder %v261, %v881
        %vm977 = vcmp.eq.s32.totalorder %v262, %v881
        %vm978 = vcmp.eq.s32.totalorder %v260, %v884
        %vm979 = vcmp.eq.s32.totalorder %v261, %v884
        %vm980 = vcmp.eq.s32.totalorder %v262, %v884
        %vm981 = vcmp.eq.s32.totalorder %v260, %v887
        %vm982 = vcmp.eq.s32.totalorder %v261, %v887
        %vm983 = vcmp.eq.s32.totalorder %v262, %v887
        %vm984 = vcmp.eq.s32.totalorder %v260, %v890
        %vm985 = vcmp.eq.s32.totalorder %v261, %v890
        %vm986 = vcmp.eq.s32.totalorder %v262, %v890
        %vm987 = vcmp.eq.s32.totalorder %v260, %v893
        %vm988 = vcmp.eq.s32.totalorder %v261, %v893
        %vm989 = vcmp.eq.s32.totalorder %v262, %v893
        %vm990 = vcmp.eq.s32.totalorder %v260, %v896
        %vm991 = vcmp.eq.s32.totalorder %v261, %v896
        %vm992 = vcmp.eq.s32.totalorder %v262, %v896
        %vm993 = vcmp.eq.s32.totalorder %v260, %v899
        %vm994 = vcmp.eq.s32.totalorder %v261, %v899
        %vm995 = vcmp.eq.s32.totalorder %v262, %v899
        %vm996 = vcmp.eq.s32.totalorder %v260, %v902
        %vm997 = vcmp.eq.s32.totalorder %v261, %v902
        %vm998 = vcmp.eq.s32.totalorder %v262, %v902
        %vm999 = vmor %vm679, %vm903
        %vm1000 = vmor %vm680, %vm904
        %vm1001 = vmor %vm681, %vm905
        %vm1002 = vmor %vm682, %vm906
        %vm1003 = vmor %vm683, %vm907
        %vm1004 = vmor %vm684, %vm908
        %vm1005 = vmor %vm685, %vm909
        %vm1006 = vmor %vm686, %vm910
        %vm1007 = vmor %vm687, %vm911
        %vm1008 = vmor %vm688, %vm912
        %vm1009 = vmor %vm689, %vm913
        %vm1010 = vmor %vm690, %vm914
        %vm1011 = vmor %vm691, %vm915
        %vm1012 = vmor %vm692, %vm916
        %vm1013 = vmor %vm693, %vm917
        %vm1014 = vmor %vm694, %vm918
        %vm1015 = vmor %vm695, %vm919
        %vm1016 = vmor %vm696, %vm920
        %vm1017 = vmor %vm697, %vm921
        %vm1018 = vmor %vm698, %vm922
        %vm1019 = vmor %vm699, %vm923
        %vm1020 = vmor %vm700, %vm924
        %vm1021 = vmor %vm701, %vm925
        %vm1022 = vmor %vm702, %vm926
        %vm1023 = vmor %vm703, %vm927
        %vm1024 = vmor %vm704, %vm928
        %vm1025 = vmor %vm705, %vm929
        %vm1026 = vmor %vm706, %vm930
        %vm1027 = vmor %vm707, %vm931
        %vm1028 = vmor %vm708, %vm932
        %vm1029 = vmor %vm709, %vm933
        %vm1030 = vmor %vm710, %vm934
        %vm1031 = vmor %vm711, %vm935
        %vm1032 = vmor %vm712, %vm936
        %vm1033 = vmor %vm713, %vm937
        %vm1034 = vmor %vm714, %vm938
        %vm1035 = vmor %vm715, %vm939
        %vm1036 = vmor %vm716, %vm940
        %vm1037 = vmor %vm717, %vm941
        %vm1038 = vmor %vm718, %vm942
        %vm1039 = vmor %vm719, %vm943
        %vm1040 = vmor %vm720, %vm944
        %vm1041 = vmor %vm721, %vm945
        %vm1042 = vmor %vm722, %vm946
        %vm1043 = vmor %vm723, %vm947
        %vm1044 = vmor %vm724, %vm948
        %vm1045 = vmor %vm725, %vm949
        %vm1046 = vmor %vm726, %vm950
        %vm1047 = vmor %vm727, %vm951
        %vm1048 = vmor %vm728, %vm952
        %vm1049 = vmor %vm729, %vm953
        %vm1050 = vmor %vm730, %vm954
        %vm1051 = vmor %vm731, %vm955
        %vm1052 = vmor %vm732, %vm956
        %vm1053 = vmor %vm733, %vm957
        %vm1054 = vmor %vm734, %vm958
        %vm1055 = vmor %vm735, %vm959
        %vm1056 = vmor %vm736, %vm960
        %vm1057 = vmor %vm737, %vm961
        %vm1058 = vmor %vm738, %vm962
        %vm1059 = vmor %vm739, %vm963
        %vm1060 = vmor %vm740, %vm964
        %vm1061 = vmor %vm741, %vm965
        %vm1062 = vmor %vm742, %vm966
        %vm1063 = vmor %vm743, %vm967
        %vm1064 = vmor %vm744, %vm968
        %vm1065 = vmor %vm745, %vm969
        %vm1066 = vmor %vm746, %vm970
        %vm1067 = vmor %vm747, %vm971
        %vm1068 = vmor %vm748, %vm972
        %vm1069 = vmor %vm749, %vm973
        %vm1070 = vmor %vm750, %vm974
        %vm1071 = vmor %vm751, %vm975
        %vm1072 = vmor %vm752, %vm976
        %vm1073 = vmor %vm753, %vm977
        %vm1074 = vmor %vm754, %vm978
        %vm1075 = vmor %vm755, %vm979
        %vm1076 = vmor %vm756, %vm980
        %vm1077 = vmor %vm757, %vm981
        %vm1078 = vmor %vm758, %vm982
        %vm1079 = vmor %vm759, %vm983
        %vm1080 = vmor %vm760, %vm984
        %vm1081 = vmor %vm761, %vm985
        %vm1082 = vmor %vm762, %vm986
        %vm1083 = vmor %vm763, %vm987
        %vm1084 = vmor %vm764, %vm988
        %vm1085 = vmor %vm765, %vm989
        %vm1086 = vmor %vm766, %vm990
        %vm1087 = vmor %vm767, %vm991
        %vm1088 = vmor %vm768, %vm992
        %vm1089 = vmor %vm769, %vm993
        %vm1090 = vmor %vm770, %vm994
        %vm1091 = vmor %vm771, %vm995
        %vm1092 = vmor %vm772, %vm996
        %vm1093 = vmor %vm773, %vm997
        %vm1094 = vmor %vm774, %vm998
        %v1095 = vsel %vm999, 1, 0
        %v1096 = vsel %vm1000, 1, 0
        %v1097 = vsel %vm1001, 1, 0
        %v1098 = vsel %vm1002, 1, 0
        %v1099 = vsel %vm1003, 1, 0
        %v1100 = vsel %vm1004, 1, 0
        %v1101 = vsel %vm1005, 1, 0
        %v1102 = vsel %vm1006, 1, 0
        %v1103 = vsel %vm1007, 1, 0
        %v1104 = vsel %vm1008, 1, 0
        %v1105 = vsel %vm1009, 1, 0
        %v1106 = vsel %vm1010, 1, 0
        %v1107 = vsel %vm1011, 1, 0
        %v1108 = vsel %vm1012, 1, 0
        %v1109 = vsel %vm1013, 1, 0
        %v1110 = vsel %vm1014, 1, 0
        %v1111 = vsel %vm1015, 1, 0
        %v1112 = vsel %vm1016, 1, 0
        %v1113 = vsel %vm1017, 1, 0
        %v1114 = vsel %vm1018, 1, 0
        %v1115 = vsel %vm1019, 1, 0
        %v1116 = vsel %vm1020, 1, 0
        %v1117 = vsel %vm1021, 1, 0
        %v1118 = vsel %vm1022, 1, 0
        %v1119 = vsel %vm1023, 1, 0
        %v1120 = vsel %vm1024, 1, 0
        %v1121 = vsel %vm1025, 1, 0
        %v1122 = vsel %vm1026, 1, 0
        %v1123 = vsel %vm1027, 1, 0
        %v1124 = vsel %vm1028, 1, 0
        %v1125 = vsel %vm1029, 1, 0
        %v1126 = vsel %vm1030, 1, 0
        %v1127 = vsel %vm1031, 1, 0
        %v1128 = vsel %vm1032, 1, 0
        %v1129 = vsel %vm1033, 1, 0
        %v1130 = vsel %vm1034, 1, 0
        %v1131 = vsel %vm1035, 1, 0
        %v1132 = vsel %vm1036, 1, 0
        %v1133 = vsel %vm1037, 1, 0
        %v1134 = vsel %vm1038, 1, 0
        %v1135 = vsel %vm1039, 1, 0
        %v1136 = vsel %vm1040, 1, 0
        %v1137 = vsel %vm1041, 1, 0
        %v1138 = vsel %vm1042, 1, 0
        %v1139 = vsel %vm1043, 1, 0
        %v1140 = vsel %vm1044, 1, 0
        %v1141 = vsel %vm1045, 1, 0
        %v1142 = vsel %vm1046, 1, 0
        %v1143 = vsel %vm1047, 1, 0
        %v1144 = vsel %vm1048, 1, 0
        %v1145 = vsel %vm1049, 1, 0
        %v1146 = vsel %vm1050, 1, 0
        %v1147 = vsel %vm1051, 1, 0
        %v1148 = vsel %vm1052, 1, 0
        %v1149 = vsel %vm1053, 1, 0
        %v1150 = vsel %vm1054, 1, 0
        %v1151 = vsel %vm1055, 1, 0
        %v1152 = vsel %vm1056, 1, 0
        %v1153 = vsel %vm1057, 1, 0
        %v1154 = vsel %vm1058, 1, 0
        %v1155 = vsel %vm1059, 1, 0
        %v1156 = vsel %vm1060, 1, 0
        %v1157 = vsel %vm1061, 1, 0
        %v1158 = vsel %vm1062, 1, 0
        %v1159 = vsel %vm1063, 1, 0
        %v1160 = vsel %vm1064, 1, 0
        %v1161 = vsel %vm1065, 1, 0
        %v1162 = vsel %vm1066, 1, 0
        %v1163 = vsel %vm1067, 1, 0
        %v1164 = vsel %vm1068, 1, 0
        %v1165 = vsel %vm1069, 1, 0
        %v1166 = vsel %vm1070, 1, 0
        %v1167 = vsel %vm1071, 1, 0
        %v1168 = vsel %vm1072, 1, 0
        %v1169 = vsel %vm1073, 1, 0
        %v1170 = vsel %vm1074, 1, 0
        %v1171 = vsel %vm1075, 1, 0
        %v1172 = vsel %vm1076, 1, 0
        %v1173 = vsel %vm1077, 1, 0
        %v1174 = vsel %vm1078, 1, 0
        %v1175 = vsel %vm1079, 1, 0
        %v1176 = vsel %vm1080, 1, 0
        %v1177 = vsel %vm1081, 1, 0
        %v1178 = vsel %vm1082, 1, 0
        %v1179 = vsel %vm1083, 1, 0
        %v1180 = vsel %vm1084, 1, 0
        %v1181 = vsel %vm1085, 1, 0
        %v1182 = vsel %vm1086, 1, 0
        %v1183 = vsel %vm1087, 1, 0
        %v1184 = vsel %vm1088, 1, 0
        %v1185 = vsel %vm1089, 1, 0
        %v1186 = vsel %vm1090, 1, 0
        %v1187 = vsel %vm1091, 1, 0
        %v1188 = vsel %vm1092, 1, 0
        %v1189 = vsel %vm1093, 1, 0
        %v1190 = vsel %vm1094, 1, 0
        %v1191 = vcvt.s32.f32 %v1095
        %v1192 = vcvt.s32.f32 %v1096
        %v1193 = vcvt.s32.f32 %v1097
        %v1194 = vcvt.s32.f32 %v1098
        %v1195 = vcvt.s32.f32 %v1099
        %v1196 = vcvt.s32.f32 %v1100
        %v1197 = vcvt.s32.f32 %v1101
        %v1198 = vcvt.s32.f32 %v1102
        %v1199 = vcvt.s32.f32 %v1103
        %v1200 = vcvt.s32.f32 %v1104
        %v1201 = vcvt.s32.f32 %v1105
        %v1202 = vcvt.s32.f32 %v1106
        %v1203 = vcvt.s32.f32 %v1107
        %v1204 = vcvt.s32.f32 %v1108
        %v1205 = vcvt.s32.f32 %v1109
        %v1206 = vcvt.s32.f32 %v1110
        %v1207 = vcvt.s32.f32 %v1111
        %v1208 = vcvt.s32.f32 %v1112
        %v1209 = vcvt.s32.f32 %v1113
        %v1210 = vcvt.s32.f32 %v1114
        %v1211 = vcvt.s32.f32 %v1115
        %v1212 = vcvt.s32.f32 %v1116
        %v1213 = vcvt.s32.f32 %v1117
        %v1214 = vcvt.s32.f32 %v1118
        %v1215 = vcvt.s32.f32 %v1119
        %v1216 = vcvt.s32.f32 %v1120
        %v1217 = vcvt.s32.f32 %v1121
        %v1218 = vcvt.s32.f32 %v1122
        %v1219 = vcvt.s32.f32 %v1123
        %v1220 = vcvt.s32.f32 %v1124
        %v1221 = vcvt.s32.f32 %v1125
        %v1222 = vcvt.s32.f32 %v1126
        %v1223 = vcvt.s32.f32 %v1127
        %v1224 = vcvt.s32.f32 %v1128
        %v1225 = vcvt.s32.f32 %v1129
        %v1226 = vcvt.s32.f32 %v1130
        %v1227 = vcvt.s32.f32 %v1131
        %v1228 = vcvt.s32.f32 %v1132
        %v1229 = vcvt.s32.f32 %v1133
        %v1230 = vcvt.s32.f32 %v1134
        %v1231 = vcvt.s32.f32 %v1135
        %v1232 = vcvt.s32.f32 %v1136
        %v1233 = vcvt.s32.f32 %v1137
        %v1234 = vcvt.s32.f32 %v1138
        %v1235 = vcvt.s32.f32 %v1139
        %v1236 = vcvt.s32.f32 %v1140
        %v1237 = vcvt.s32.f32 %v1141
        %v1238 = vcvt.s32.f32 %v1142
        %v1239 = vcvt.s32.f32 %v1143
        %v1240 = vcvt.s32.f32 %v1144
        %v1241 = vcvt.s32.f32 %v1145
        %v1242 = vcvt.s32.f32 %v1146
        %v1243 = vcvt.s32.f32 %v1147
        %v1244 = vcvt.s32.f32 %v1148
        %v1245 = vcvt.s32.f32 %v1149
        %v1246 = vcvt.s32.f32 %v1150
        %v1247 = vcvt.s32.f32 %v1151
        %v1248 = vcvt.s32.f32 %v1152
        %v1249 = vcvt.s32.f32 %v1153
        %v1250 = vcvt.s32.f32 %v1154
        %v1251 = vcvt.s32.f32 %v1155
        %v1252 = vcvt.s32.f32 %v1156
        %v1253 = vcvt.s32.f32 %v1157
        %v1254 = vcvt.s32.f32 %v1158
        %v1255 = vcvt.s32.f32 %v1159
        %v1256 = vcvt.s32.f32 %v1160
        %v1257 = vcvt.s32.f32 %v1161
        %v1258 = vcvt.s32.f32 %v1162
        %v1259 = vcvt.s32.f32 %v1163
        %v1260 = vcvt.s32.f32 %v1164
        %v1261 = vcvt.s32.f32 %v1165
        %v1262 = vcvt.s32.f32 %v1166
        %v1263 = vcvt.s32.f32 %v1167
        %v1264 = vcvt.s32.f32 %v1168
        %v1265 = vcvt.s32.f32 %v1169
        %v1266 = vcvt.s32.f32 %v1170
        %v1267 = vcvt.s32.f32 %v1171
        %v1268 = vcvt.s32.f32 %v1172
        %v1269 = vcvt.s32.f32 %v1173
        %v1270 = vcvt.s32.f32 %v1174
        %v1271 = vcvt.s32.f32 %v1175
        %v1272 = vcvt.s32.f32 %v1176
        %v1273 = vcvt.s32.f32 %v1177
        %v1274 = vcvt.s32.f32 %v1178
        %v1275 = vcvt.s32.f32 %v1179
        %v1276 = vcvt.s32.f32 %v1180
        %v1277 = vcvt.s32.f32 %v1181
        %v1278 = vcvt.s32.f32 %v1182
        %v1279 = vcvt.s32.f32 %v1183
        %v1280 = vcvt.s32.f32 %v1184
        %v1281 = vcvt.s32.f32 %v1185
        %v1282 = vcvt.s32.f32 %v1186
        %v1283 = vcvt.s32.f32 %v1187
        %v1284 = vcvt.s32.f32 %v1188
        %v1285 = vcvt.s32.f32 %v1189
        %v1286 = vcvt.s32.f32 %v1190
        %v1287 = vpack.c.bf16 %v1194, %v1191
        %v1288 = vpack.c.bf16 %v1195, %v1192
        %v1289 = vpack.c.bf16 %v1196, %v1193
        %v1290 = vpack.c.bf16 %v1200, %v1197
        %v1291 = vpack.c.bf16 %v1201, %v1198
        %v1292 = vpack.c.bf16 %v1202, %v1199
        %v1293 = vpack.c.bf16 %v1206, %v1203
        %v1294 = vpack.c.bf16 %v1207, %v1204
        %v1295 = vpack.c.bf16 %v1208, %v1205
        %v1296 = vpack.c.bf16 %v1212, %v1209
        %v1297 = vpack.c.bf16 %v1213, %v1210
        %v1298 = vpack.c.bf16 %v1214, %v1211
        %v1299 = vpack.c.bf16 %v1218, %v1215
        %v1300 = vpack.c.bf16 %v1219, %v1216
        %v1301 = vpack.c.bf16 %v1220, %v1217
        %v1302 = vpack.c.bf16 %v1224, %v1221
        %v1303 = vpack.c.bf16 %v1225, %v1222
        %v1304 = vpack.c.bf16 %v1226, %v1223
        %v1305 = vpack.c.bf16 %v1230, %v1227
        %v1306 = vpack.c.bf16 %v1231, %v1228
        %v1307 = vpack.c.bf16 %v1232, %v1229
        %v1308 = vpack.c.bf16 %v1236, %v1233
        %v1309 = vpack.c.bf16 %v1237, %v1234
        %v1310 = vpack.c.bf16 %v1238, %v1235
        %v1311 = vpack.c.bf16 %v1242, %v1239
        %v1312 = vpack.c.bf16 %v1243, %v1240
        %v1313 = vpack.c.bf16 %v1244, %v1241
        %v1314 = vpack.c.bf16 %v1248, %v1245
        %v1315 = vpack.c.bf16 %v1249, %v1246
        %v1316 = vpack.c.bf16 %v1250, %v1247
        %v1317 = vpack.c.bf16 %v1254, %v1251
        %v1318 = vpack.c.bf16 %v1255, %v1252
        %v1319 = vpack.c.bf16 %v1256, %v1253
        %v1320 = vpack.c.bf16 %v1260, %v1257
        %v1321 = vpack.c.bf16 %v1261, %v1258
        %v1322 = vpack.c.bf16 %v1262, %v1259
        %v1323 = vpack.c.bf16 %v1266, %v1263
        %v1324 = vpack.c.bf16 %v1267, %v1264
        %v1325 = vpack.c.bf16 %v1268, %v1265
        %v1326 = vpack.c.bf16 %v1272, %v1269
        %v1327 = vpack.c.bf16 %v1273, %v1270
        %v1328 = vpack.c.bf16 %v1274, %v1271
        %v1329 = vpack.c.bf16 %v1278, %v1275
        %v1330 = vpack.c.bf16 %v1279, %v1276
        %v1331 = vpack.c.bf16 %v1280, %v1277
        %v1332 = vpack.c.bf16 %v1284, %v1281
        %v1333 = vpack.c.bf16 %v1285, %v1282
        %v1334 = vpack.c.bf16 %v1286, %v1283
        %v1335 = vld [vmem:[%s1] sm:$0xf]
        %v1336 = vld [vmem:[%s1 + $0x4] sm:$0xf]
        %v1337 = vld [vmem:[%s1 + $0x8] sm:$0xf]
        %v1338 = vld [vmem:[%s1 + $0xc] sm:$0xf]
        %v1339 = vld [vmem:[%s1 + $0x10] sm:$0xf]
        %v1340 = vld [vmem:[%s1 + $0x14] sm:$0xf]
        %v1341 = vld [vmem:[%s1 + $0x18] sm:$0xf]
        %v1342 = vld [vmem:[%s1 + $0x1c] sm:$0xf]
        %v1343 = vld [vmem:[%s1 + $0x20] sm:$0xf]
        %v1344 = vld [vmem:[%s1 + $0x24] sm:$0xf]
        %v1345 = vld [vmem:[%s1 + $0x28] sm:$0xf]
        %v1346 = vld [vmem:[%s1 + $0x2c] sm:$0xf]
        %v1347 = vld [vmem:[%s1 + $0x30] sm:$0xf]
        %v1348 = vld [vmem:[%s1 + $0x34] sm:$0xf]
        %v1349 = vld [vmem:[%s1 + $0x38] sm:$0xf]
        %v1350 = vld [vmem:[%s1 + $0x3c] sm:$0xf]
        %v1351 = vld [vmem:[%s1 + $0x40] sm:$0xf]
        %v1352 = vld [vmem:[%s1 + $0x44] sm:$0xf]
        %v1353 = vld [vmem:[%s1 + $0x48] sm:$0xf]
        %v1354 = vld [vmem:[%s1 + $0x4c] sm:$0xf]
        %v1355 = vld [vmem:[%s1 + $0x50] sm:$0xf]
        %v1356 = vld [vmem:[%s1 + $0x54] sm:$0xf]
        %v1357 = vld [vmem:[%s1 + $0x58] sm:$0xf]
        %v1358 = vld [vmem:[%s1 + $0x5c] sm:$0xf]
        %v1359 = vld [vmem:[%s1 + $0x60] sm:$0xf]
        %v1360 = vld [vmem:[%s1 + $0x64] sm:$0xf]
        %v1361 = vld [vmem:[%s1 + $0x68] sm:$0xf]
        %v1362 = vld [vmem:[%s1 + $0x6c] sm:$0xf]
        %v1363 = vld [vmem:[%s1 + $0x70] sm:$0xf]
        %v1364 = vld [vmem:[%s1 + $0x74] sm:$0xf]
        %v1365 = vld [vmem:[%s1 + $0x78] sm:$0xf]
        %v1366 = vld [vmem:[%s1 + $0x7c] sm:$0xf]
        %v1367 = vld [vmem:[%s1 + $0x80] sm:$0xf]
        %v1368 = vld [vmem:[%s1 + $0x84] sm:$0xf]
        %v1369 = vld [vmem:[%s1 + $0x88] sm:$0xf]
        %v1370 = vld [vmem:[%s1 + $0x8c] sm:$0xf]
        %v1371 = vld [vmem:[%s1 + $0x90] sm:$0xf]
        %v1372 = vld [vmem:[%s1 + $0x94] sm:$0xf]
        %v1373 = vld [vmem:[%s1 + $0x98] sm:$0xf]
        %v1374 = vld [vmem:[%s1 + $0x9c] sm:$0xf]
        %v1375 = vld [vmem:[%s1 + $0xa0] sm:$0xf]
        %v1376 = vld [vmem:[%s1 + $0xa4] sm:$0xf]
        %v1377 = vld [vmem:[%s1 + $0xa8] sm:$0xf]
        %v1378 = vld [vmem:[%s1 + $0xac] sm:$0xf]
        %v1379 = vld [vmem:[%s1 + $0xb0] sm:$0xf]
        %v1380 = vld [vmem:[%s1 + $0xb4] sm:$0xf]
        %v1381 = vld [vmem:[%s1 + $0xb8] sm:$0xf]
        %v1382 = vld [vmem:[%s1 + $0xbc] sm:$0xf]
        %v1383 = vld [vmem:[%s2] sm:$0x1]
        %v1385 = vperm.slane %v1383, 0
        %v1435 = vunpack.c.l.b16 %v1335
        %v1436 = vunpack.c.l.b16 %v1336
        %v1437 = vunpack.c.l.b16 %v1337
        %v1438 = vunpack.c.l.b16 %v1338
        %v1439 = vunpack.c.l.b16 %v1339
        %v1440 = vunpack.c.l.b16 %v1340
        %v1441 = vunpack.c.l.b16 %v1341
        %v1442 = vunpack.c.l.b16 %v1342
        %v1443 = vunpack.c.l.b16 %v1343
        %v1444 = vunpack.c.l.b16 %v1344
        %v1445 = vunpack.c.l.b16 %v1345
        %v1446 = vunpack.c.l.b16 %v1346
        %v1447 = vunpack.c.l.b16 %v1347
        %v1448 = vunpack.c.l.b16 %v1348
        %v1449 = vunpack.c.l.b16 %v1349
        %v1450 = vunpack.c.l.b16 %v1350
        %v1451 = vunpack.c.l.b16 %v1351
        %v1452 = vunpack.c.l.b16 %v1352
        %v1453 = vunpack.c.l.b16 %v1353
        %v1454 = vunpack.c.l.b16 %v1354
        %v1455 = vunpack.c.l.b16 %v1355
        %v1456 = vunpack.c.l.b16 %v1356
        %v1457 = vunpack.c.l.b16 %v1357
        %v1458 = vunpack.c.l.b16 %v1358
        %v1459 = vunpack.c.l.b16 %v1359
        %v1460 = vunpack.c.l.b16 %v1360
        %v1461 = vunpack.c.l.b16 %v1361
        %v1462 = vunpack.c.l.b16 %v1362
        %v1463 = vunpack.c.l.b16 %v1363
        %v1464 = vunpack.c.l.b16 %v1364
        %v1465 = vunpack.c.l.b16 %v1365
        %v1466 = vunpack.c.l.b16 %v1366
        %v1467 = vunpack.c.l.b16 %v1367
        %v1468 = vunpack.c.l.b16 %v1368
        %v1469 = vunpack.c.l.b16 %v1369
        %v1470 = vunpack.c.l.b16 %v1370
        %v1471 = vunpack.c.l.b16 %v1371
        %v1472 = vunpack.c.l.b16 %v1372
        %v1473 = vunpack.c.l.b16 %v1373
        %v1474 = vunpack.c.l.b16 %v1374
        %v1475 = vunpack.c.l.b16 %v1375
        %v1476 = vunpack.c.l.b16 %v1376
        %v1477 = vunpack.c.l.b16 %v1377
        %v1478 = vunpack.c.l.b16 %v1378
        %v1479 = vunpack.c.l.b16 %v1379
        %v1480 = vunpack.c.l.b16 %v1380
        %v1481 = vunpack.c.l.b16 %v1381
        %v1482 = vunpack.c.l.b16 %v1382
        %v1483 = vpack.c.b16 %v1436, %v1435
        %v1484 = vpack.c.b16 %v1438, %v1437
        %v1485 = vpack.c.b16 %v1440, %v1439
        %v1486 = vpack.c.b16 %v1442, %v1441
        %v1487 = vpack.c.b16 %v1444, %v1443
        %v1488 = vpack.c.b16 %v1446, %v1445
        %v1489 = vpack.c.b16 %v1448, %v1447
        %v1490 = vpack.c.b16 %v1450, %v1449
        %v1491 = vpack.c.b16 %v1452, %v1451
        %v1492 = vpack.c.b16 %v1454, %v1453
        %v1493 = vpack.c.b16 %v1456, %v1455
        %v1494 = vpack.c.b16 %v1458, %v1457
        %v1495 = vpack.c.b16 %v1460, %v1459
        %v1496 = vpack.c.b16 %v1462, %v1461
        %v1497 = vpack.c.b16 %v1464, %v1463
        %v1498 = vpack.c.b16 %v1466, %v1465
        %v1499 = vpack.c.b16 %v1468, %v1467
        %v1500 = vpack.c.b16 %v1470, %v1469
        %v1501 = vpack.c.b16 %v1472, %v1471
        %v1502 = vpack.c.b16 %v1474, %v1473
        %v1503 = vpack.c.b16 %v1476, %v1475
        %v1504 = vpack.c.b16 %v1478, %v1477
        %v1505 = vpack.c.b16 %v1480, %v1479
        %v1506 = vpack.c.b16 %v1482, %v1481
        %1531 = vmatpush.bf16.msra.mxu0 %v1490
        %1532 = vmatpush.bf16.msra.mxu0 %v1489
        %1533 = vmatpush.bf16.msra.mxu0 %v1488
        %1534 = vmatpush.bf16.msra.mxu0 %v1487
        %1535 = vmatpush.bf16.msra.mxu0 %v1486
        %1536 = vmatpush.bf16.msra.mxu0 %v1485
        %1537 = vmatpush.bf16.msra.mxu0 %v1484
        %1538 = vmatpush.bf16.msra.mxu0 %v1483
        %1539 = vmatmul.bf16.gmra.mxu0 %v1287
        %v1540 = vpop.f32.mrf.mxu0
        %v1541 = vadd.f32 %v1385, %v1540
        %v1542 = vpop.f32.mrf.mxu0
        %v1543 = vadd.f32 %v1385, %v1542
        %1544 = vmatmul.bf16.gmra.mxu0 %v1290
        %v1545 = vpop.f32.mrf.mxu0
        %v1546 = vadd.f32 %v1385, %v1545
        %v1547 = vpop.f32.mrf.mxu0
        %v1548 = vadd.f32 %v1385, %v1547
        %1549 = vmatmul.bf16.gmra.mxu0 %v1293
        %v1550 = vpop.f32.mrf.mxu0
        %v1551 = vadd.f32 %v1385, %v1550
        %v1552 = vpop.f32.mrf.mxu0
        %v1553 = vadd.f32 %v1385, %v1552
        %1554 = vmatmul.bf16.gmra.mxu0 %v1296
        %v1555 = vpop.f32.mrf.mxu0
        %v1556 = vadd.f32 %v1385, %v1555
        %v1557 = vpop.f32.mrf.mxu0
        %v1558 = vadd.f32 %v1385, %v1557
        %1559 = vmatmul.bf16.gmra.mxu0 %v1299
        %v1560 = vpop.f32.mrf.mxu0
        %v1561 = vadd.f32 %v1385, %v1560
        %v1562 = vpop.f32.mrf.mxu0
        %v1563 = vadd.f32 %v1385, %v1562
        %1564 = vmatmul.bf16.gmra.mxu0 %v1302
        %v1565 = vpop.f32.mrf.mxu0
        %v1566 = vadd.f32 %v1385, %v1565
        %v1567 = vpop.f32.mrf.mxu0
        %v1568 = vadd.f32 %v1385, %v1567
        %1569 = vmatmul.bf16.gmra.mxu0 %v1305
        %v1570 = vpop.f32.mrf.mxu0
        %v1571 = vadd.f32 %v1385, %v1570
        %v1572 = vpop.f32.mrf.mxu0
        %v1573 = vadd.f32 %v1385, %v1572
        %1574 = vmatmul.bf16.gmra.mxu0 %v1308
        %v1575 = vpop.f32.mrf.mxu0
        %v1576 = vadd.f32 %v1385, %v1575
        %v1577 = vpop.f32.mrf.mxu0
        %v1578 = vadd.f32 %v1385, %v1577
        %1579 = vmatmul.bf16.gmra.mxu0 %v1311
        %v1580 = vpop.f32.mrf.mxu0
        %v1581 = vadd.f32 %v1385, %v1580
        %v1582 = vpop.f32.mrf.mxu0
        %v1583 = vadd.f32 %v1385, %v1582
        %1584 = vmatmul.bf16.gmra.mxu0 %v1314
        %v1585 = vpop.f32.mrf.mxu0
        %v1586 = vadd.f32 %v1385, %v1585
        %v1587 = vpop.f32.mrf.mxu0
        %v1588 = vadd.f32 %v1385, %v1587
        %1589 = vmatmul.bf16.gmra.mxu0 %v1317
        %v1590 = vpop.f32.mrf.mxu0
        %v1591 = vadd.f32 %v1385, %v1590
        %v1592 = vpop.f32.mrf.mxu0
        %v1593 = vadd.f32 %v1385, %v1592
        %1594 = vmatmul.bf16.gmra.mxu0 %v1320
        %v1595 = vpop.f32.mrf.mxu0
        %v1596 = vadd.f32 %v1385, %v1595
        %v1597 = vpop.f32.mrf.mxu0
        %v1598 = vadd.f32 %v1385, %v1597
        %1599 = vmatmul.bf16.gmra.mxu0 %v1323
        %v1600 = vpop.f32.mrf.mxu0
        %v1601 = vadd.f32 %v1385, %v1600
        %v1602 = vpop.f32.mrf.mxu0
        %v1603 = vadd.f32 %v1385, %v1602
        %1604 = vmatmul.bf16.gmra.mxu0 %v1326
        %v1605 = vpop.f32.mrf.mxu0
        %v1606 = vadd.f32 %v1385, %v1605
        %v1607 = vpop.f32.mrf.mxu0
        %v1608 = vadd.f32 %v1385, %v1607
        %1609 = vmatmul.bf16.gmra.mxu0 %v1329
        %v1610 = vpop.f32.mrf.mxu0
        %v1611 = vadd.f32 %v1385, %v1610
        %v1612 = vpop.f32.mrf.mxu0
        %v1613 = vadd.f32 %v1385, %v1612
        %1614 = vmatmul.bf16.gmra.mxu0 %v1332
        %v1615 = vpop.f32.mrf.mxu0
        %v1616 = vadd.f32 %v1385, %v1615
        %v1617 = vpop.f32.mrf.mxu0
        %v1618 = vadd.f32 %v1385, %v1617
        %1619 = vdwg.mxu0
        %1620 = vmatpush.bf16.msra.mxu0 %v1498
        %1621 = vmatpush.bf16.msra.mxu0 %v1497
        %1622 = vmatpush.bf16.msra.mxu0 %v1496
        %1623 = vmatpush.bf16.msra.mxu0 %v1495
        %1624 = vmatpush.bf16.msra.mxu0 %v1494
        %1625 = vmatpush.bf16.msra.mxu0 %v1493
        %1626 = vmatpush.bf16.msra.mxu0 %v1492
        %1627 = vmatpush.bf16.msra.mxu0 %v1491
        %1628 = vmatmul.bf16.gmra.mxu0 %v1288
        %v1629 = vpop.f32.mrf.mxu0
        %v1630 = vadd.f32 %v1541, %v1629
        %v1631 = vpop.f32.mrf.mxu0
        %v1632 = vadd.f32 %v1543, %v1631
        %1633 = vmatmul.bf16.gmra.mxu0 %v1291
        %v1634 = vpop.f32.mrf.mxu0
        %v1635 = vadd.f32 %v1546, %v1634
        %v1636 = vpop.f32.mrf.mxu0
        %v1637 = vadd.f32 %v1548, %v1636
        %1638 = vmatmul.bf16.gmra.mxu0 %v1294
        %v1639 = vpop.f32.mrf.mxu0
        %v1640 = vadd.f32 %v1551, %v1639
        %v1641 = vpop.f32.mrf.mxu0
        %v1642 = vadd.f32 %v1553, %v1641
        %1643 = vmatmul.bf16.gmra.mxu0 %v1297
        %v1644 = vpop.f32.mrf.mxu0
        %v1645 = vadd.f32 %v1556, %v1644
        %v1646 = vpop.f32.mrf.mxu0
        %v1647 = vadd.f32 %v1558, %v1646
        %1648 = vmatmul.bf16.gmra.mxu0 %v1300
        %v1649 = vpop.f32.mrf.mxu0
        %v1650 = vadd.f32 %v1561, %v1649
        %v1651 = vpop.f32.mrf.mxu0
        %v1652 = vadd.f32 %v1563, %v1651
        %1653 = vmatmul.bf16.gmra.mxu0 %v1303
        %v1654 = vpop.f32.mrf.mxu0
        %v1655 = vadd.f32 %v1566, %v1654
        %v1656 = vpop.f32.mrf.mxu0
        %v1657 = vadd.f32 %v1568, %v1656
        %1658 = vmatmul.bf16.gmra.mxu0 %v1306
        %v1659 = vpop.f32.mrf.mxu0
        %v1660 = vadd.f32 %v1571, %v1659
        %v1661 = vpop.f32.mrf.mxu0
        %v1662 = vadd.f32 %v1573, %v1661
        %1663 = vmatmul.bf16.gmra.mxu0 %v1309
        %v1664 = vpop.f32.mrf.mxu0
        %v1665 = vadd.f32 %v1576, %v1664
        %v1666 = vpop.f32.mrf.mxu0
        %v1667 = vadd.f32 %v1578, %v1666
        %1668 = vmatmul.bf16.gmra.mxu0 %v1312
        %v1669 = vpop.f32.mrf.mxu0
        %v1670 = vadd.f32 %v1581, %v1669
        %v1671 = vpop.f32.mrf.mxu0
        %v1672 = vadd.f32 %v1583, %v1671
        %1673 = vmatmul.bf16.gmra.mxu0 %v1315
        %v1674 = vpop.f32.mrf.mxu0
        %v1675 = vadd.f32 %v1586, %v1674
        %v1676 = vpop.f32.mrf.mxu0
        %v1677 = vadd.f32 %v1588, %v1676
        %1678 = vmatmul.bf16.gmra.mxu0 %v1318
        %v1679 = vpop.f32.mrf.mxu0
        %v1680 = vadd.f32 %v1591, %v1679
        %v1681 = vpop.f32.mrf.mxu0
        %v1682 = vadd.f32 %v1593, %v1681
        %1683 = vmatmul.bf16.gmra.mxu0 %v1321
        %v1684 = vpop.f32.mrf.mxu0
        %v1685 = vadd.f32 %v1596, %v1684
        %v1686 = vpop.f32.mrf.mxu0
        %v1687 = vadd.f32 %v1598, %v1686
        %1688 = vmatmul.bf16.gmra.mxu0 %v1324
        %v1689 = vpop.f32.mrf.mxu0
        %v1690 = vadd.f32 %v1601, %v1689
        %v1691 = vpop.f32.mrf.mxu0
        %v1692 = vadd.f32 %v1603, %v1691
        %1693 = vmatmul.bf16.gmra.mxu0 %v1327
        %v1694 = vpop.f32.mrf.mxu0
        %v1695 = vadd.f32 %v1606, %v1694
        %v1696 = vpop.f32.mrf.mxu0
        %v1697 = vadd.f32 %v1608, %v1696
        %1698 = vmatmul.bf16.gmra.mxu0 %v1330
        %v1699 = vpop.f32.mrf.mxu0
        %v1700 = vadd.f32 %v1611, %v1699
        %v1701 = vpop.f32.mrf.mxu0
        %v1702 = vadd.f32 %v1613, %v1701
        %1703 = vmatmul.bf16.gmra.mxu0 %v1333
        %v1704 = vpop.f32.mrf.mxu0
        %v1705 = vadd.f32 %v1616, %v1704
        %v1706 = vpop.f32.mrf.mxu0
        %v1707 = vadd.f32 %v1618, %v1706
        %1708 = vdwg.mxu0
        %1709 = vmatpush.bf16.msra.mxu0 %v1506
        %1710 = vmatpush.bf16.msra.mxu0 %v1505
        %1711 = vmatpush.bf16.msra.mxu0 %v1504
        %1712 = vmatpush.bf16.msra.mxu0 %v1503
        %1713 = vmatpush.bf16.msra.mxu0 %v1502
        %1714 = vmatpush.bf16.msra.mxu0 %v1501
        %1715 = vmatpush.bf16.msra.mxu0 %v1500
        %1716 = vmatpush.bf16.msra.mxu0 %v1499
        %1717 = vmatmul.bf16.gmra.mxu0 %v1289
        %v1718 = vpop.f32.mrf.mxu0
        %v1719 = vadd.f32 %v1630, %v1718
        %v1720 = vpop.f32.mrf.mxu0
        %v1721 = vadd.f32 %v1632, %v1720
        %1722 = vmatmul.bf16.gmra.mxu0 %v1292
        %v1723 = vpop.f32.mrf.mxu0
        %v1724 = vadd.f32 %v1635, %v1723
        %v1725 = vpop.f32.mrf.mxu0
        %v1726 = vadd.f32 %v1637, %v1725
        %1727 = vmatmul.bf16.gmra.mxu0 %v1295
        %v1728 = vpop.f32.mrf.mxu0
        %v1729 = vadd.f32 %v1640, %v1728
        %v1730 = vpop.f32.mrf.mxu0
        %v1731 = vadd.f32 %v1642, %v1730
        %1732 = vmatmul.bf16.gmra.mxu0 %v1298
        %v1733 = vpop.f32.mrf.mxu0
        %v1734 = vadd.f32 %v1645, %v1733
        %v1735 = vpop.f32.mrf.mxu0
        %v1736 = vadd.f32 %v1647, %v1735
        %1737 = vmatmul.bf16.gmra.mxu0 %v1301
        %v1738 = vpop.f32.mrf.mxu0
        %v1739 = vadd.f32 %v1650, %v1738
        %v1740 = vpop.f32.mrf.mxu0
        %v1741 = vadd.f32 %v1652, %v1740
        %1742 = vmatmul.bf16.gmra.mxu0 %v1304
        %v1743 = vpop.f32.mrf.mxu0
        %v1744 = vadd.f32 %v1655, %v1743
        %v1745 = vpop.f32.mrf.mxu0
        %v1746 = vadd.f32 %v1657, %v1745
        %1747 = vmatmul.bf16.gmra.mxu0 %v1307
        %v1748 = vpop.f32.mrf.mxu0
        %v1749 = vadd.f32 %v1660, %v1748
        %v1750 = vpop.f32.mrf.mxu0
        %v1751 = vadd.f32 %v1662, %v1750
        %1752 = vmatmul.bf16.gmra.mxu0 %v1310
        %v1753 = vpop.f32.mrf.mxu0
        %v1754 = vadd.f32 %v1665, %v1753
        %v1755 = vpop.f32.mrf.mxu0
        %v1756 = vadd.f32 %v1667, %v1755
        %1757 = vmatmul.bf16.gmra.mxu0 %v1313
        %v1758 = vpop.f32.mrf.mxu0
        %v1759 = vadd.f32 %v1670, %v1758
        %v1760 = vpop.f32.mrf.mxu0
        %v1761 = vadd.f32 %v1672, %v1760
        %1762 = vmatmul.bf16.gmra.mxu0 %v1316
        %v1763 = vpop.f32.mrf.mxu0
        %v1764 = vadd.f32 %v1675, %v1763
        %v1765 = vpop.f32.mrf.mxu0
        %v1766 = vadd.f32 %v1677, %v1765
        %1767 = vmatmul.bf16.gmra.mxu0 %v1319
        %v1768 = vpop.f32.mrf.mxu0
        %v1769 = vadd.f32 %v1680, %v1768
        %v1770 = vpop.f32.mrf.mxu0
        %v1771 = vadd.f32 %v1682, %v1770
        %1772 = vmatmul.bf16.gmra.mxu0 %v1322
        %v1773 = vpop.f32.mrf.mxu0
        %v1774 = vadd.f32 %v1685, %v1773
        %v1775 = vpop.f32.mrf.mxu0
        %v1776 = vadd.f32 %v1687, %v1775
        %1777 = vmatmul.bf16.gmra.mxu0 %v1325
        %v1778 = vpop.f32.mrf.mxu0
        %v1779 = vadd.f32 %v1690, %v1778
        %v1780 = vpop.f32.mrf.mxu0
        %v1781 = vadd.f32 %v1692, %v1780
        %1782 = vmatmul.bf16.gmra.mxu0 %v1328
        %v1783 = vpop.f32.mrf.mxu0
        %v1784 = vadd.f32 %v1695, %v1783
        %v1785 = vpop.f32.mrf.mxu0
        %v1786 = vadd.f32 %v1697, %v1785
        %1787 = vmatmul.bf16.gmra.mxu0 %v1331
        %v1788 = vpop.f32.mrf.mxu0
        %v1789 = vadd.f32 %v1700, %v1788
        %v1790 = vpop.f32.mrf.mxu0
        %v1791 = vadd.f32 %v1702, %v1790
        %1792 = vmatmul.bf16.gmra.mxu0 %v1334
        %v1793 = vpop.f32.mrf.mxu0
        %v1794 = vadd.f32 %v1705, %v1793
        %v1795 = vpop.f32.mrf.mxu0
        %v1796 = vadd.f32 %v1707, %v1795
        %1797 = vdwg.mxu0
        %v1798 = vmax.f32 %v1719, 0.0
        %v1799 = vmax.f32 %v1721, 0.0
        %v1800 = vmax.f32 %v1724, 0.0
        %v1801 = vmax.f32 %v1726, 0.0
        %v1802 = vmax.f32 %v1729, 0.0
        %v1803 = vmax.f32 %v1731, 0.0
        %v1804 = vmax.f32 %v1734, 0.0
        %v1805 = vmax.f32 %v1736, 0.0
        %v1806 = vmax.f32 %v1739, 0.0
        %v1807 = vmax.f32 %v1741, 0.0
        %v1808 = vmax.f32 %v1744, 0.0
        %v1809 = vmax.f32 %v1746, 0.0
        %v1810 = vmax.f32 %v1749, 0.0
        %v1811 = vmax.f32 %v1751, 0.0
        %v1812 = vmax.f32 %v1754, 0.0
        %v1813 = vmax.f32 %v1756, 0.0
        %v1814 = vmax.f32 %v1759, 0.0
        %v1815 = vmax.f32 %v1761, 0.0
        %v1816 = vmax.f32 %v1764, 0.0
        %v1817 = vmax.f32 %v1766, 0.0
        %v1818 = vmax.f32 %v1769, 0.0
        %v1819 = vmax.f32 %v1771, 0.0
        %v1820 = vmax.f32 %v1774, 0.0
        %v1821 = vmax.f32 %v1776, 0.0
        %v1822 = vmax.f32 %v1779, 0.0
        %v1823 = vmax.f32 %v1781, 0.0
        %v1824 = vmax.f32 %v1784, 0.0
        %v1825 = vmax.f32 %v1786, 0.0
        %v1826 = vmax.f32 %v1789, 0.0
        %v1827 = vmax.f32 %v1791, 0.0
        %v1828 = vmax.f32 %v1794, 0.0
        %v1829 = vmax.f32 %v1796, 0.0
        %v1830 = vpack.c.bf16 %v1799, %v1798
        %v1831 = vpack.c.bf16 %v1801, %v1800
        %v1832 = vpack.c.bf16 %v1803, %v1802
        %v1833 = vpack.c.bf16 %v1805, %v1804
        %v1834 = vpack.c.bf16 %v1807, %v1806
        %v1835 = vpack.c.bf16 %v1809, %v1808
        %v1836 = vpack.c.bf16 %v1811, %v1810
        %v1837 = vpack.c.bf16 %v1813, %v1812
        %v1838 = vpack.c.bf16 %v1815, %v1814
        %v1839 = vpack.c.bf16 %v1817, %v1816
        %v1840 = vpack.c.bf16 %v1819, %v1818
        %v1841 = vpack.c.bf16 %v1821, %v1820
        %v1842 = vpack.c.bf16 %v1823, %v1822
        %v1843 = vpack.c.bf16 %v1825, %v1824
        %v1844 = vpack.c.bf16 %v1827, %v1826
        %v1845 = vpack.c.bf16 %v1829, %v1828
        %v1846 = vld [vmem:[%s3] sm:$0xf]
        %v1847 = vld [vmem:[%s3 + $0x4] sm:$0xf]
        %v1848 = vld [vmem:[%s3 + $0x8] sm:$0xf]
        %v1849 = vld [vmem:[%s3 + $0xc] sm:$0xf]
        %v1850 = vld [vmem:[%s3 + $0x10] sm:$0xf]
        %v1851 = vld [vmem:[%s3 + $0x14] sm:$0xf]
        %v1852 = vld [vmem:[%s3 + $0x18] sm:$0xf]
        %v1853 = vld [vmem:[%s3 + $0x1c] sm:$0xf]
        %v1854 = vld [vmem:[%s4] sm:$0x1]
        %v1856 = vperm.slane %v1854, 0
        %v1866 = vunpack.c.l.b16 %v1846
        %v1867 = vunpack.c.l.b16 %v1847
        %v1868 = vunpack.c.l.b16 %v1848
        %v1869 = vunpack.c.l.b16 %v1849
        %v1870 = vunpack.c.l.b16 %v1850
        %v1871 = vunpack.c.l.b16 %v1851
        %v1872 = vunpack.c.l.b16 %v1852
        %v1873 = vunpack.c.l.b16 %v1853
        %v1874 = vpack.c.b16 %v1867, %v1866
        %v1875 = vpack.c.b16 %v1869, %v1868
        %v1876 = vpack.c.b16 %v1871, %v1870
        %v1877 = vpack.c.b16 %v1873, %v1872
        %vm1882 = vcmask 523264
        %v1884 = vsel %vm1882, %v1830, 0
        %v1887 = vsel %vm1882, %v1831, 0
        %v1890 = vsel %vm1882, %v1832, 0
        %v1893 = vsel %vm1882, %v1833, 0
        %v1896 = vsel %vm1882, %v1834, 0
        %v1899 = vsel %vm1882, %v1835, 0
        %v1902 = vsel %vm1882, %v1836, 0
        %v1905 = vsel %vm1882, %v1837, 0
        %v1908 = vsel %vm1882, %v1838, 0
        %v1911 = vsel %vm1882, %v1839, 0
        %v1914 = vsel %vm1882, %v1840, 0
        %v1917 = vsel %vm1882, %v1841, 0
        %v1920 = vsel %vm1882, %v1842, 0
        %v1923 = vsel %vm1882, %v1843, 0
        %v1926 = vsel %vm1882, %v1844, 0
        %v1929 = vsel %vm1882, %v1845, 0
        %1931 = vmatpush.bf16.msra.mxu0 0
        %1932 = vmatpush.bf16.msra.mxu0 0
        %1933 = vmatpush.bf16.msra.mxu0 0
        %1934 = vmatpush.bf16.msra.mxu0 0
        %1935 = vmatpush.bf16.msra.mxu0 %v1877
        %1936 = vmatpush.bf16.msra.mxu0 %v1876
        %1937 = vmatpush.bf16.msra.mxu0 %v1875
        %1938 = vmatpush.bf16.msra.mxu0 %v1874
        %1939 = vmatmul.bf16.gmra.mxu0 %v1884
        %v1940 = vpop.f32.mrf.mxu0
        %v1941 = vadd.f32 %v1856, %v1940
        %v1942 = vpop.f32.mrf.mxu0
        %v1943 = vadd.f32 %v1856, %v1942
        %1944 = vmatmul.bf16.gmra.mxu0 %v1887
        %v1945 = vpop.f32.mrf.mxu0
        %v1946 = vadd.f32 %v1856, %v1945
        %v1947 = vpop.f32.mrf.mxu0
        %v1948 = vadd.f32 %v1856, %v1947
        %1949 = vmatmul.bf16.gmra.mxu0 %v1890
        %v1950 = vpop.f32.mrf.mxu0
        %v1951 = vadd.f32 %v1856, %v1950
        %v1952 = vpop.f32.mrf.mxu0
        %v1953 = vadd.f32 %v1856, %v1952
        %1954 = vmatmul.bf16.gmra.mxu0 %v1893
        %v1955 = vpop.f32.mrf.mxu0
        %v1956 = vadd.f32 %v1856, %v1955
        %v1957 = vpop.f32.mrf.mxu0
        %v1958 = vadd.f32 %v1856, %v1957
        %1959 = vmatmul.bf16.gmra.mxu0 %v1896
        %v1960 = vpop.f32.mrf.mxu0
        %v1961 = vadd.f32 %v1856, %v1960
        %v1962 = vpop.f32.mrf.mxu0
        %v1963 = vadd.f32 %v1856, %v1962
        %1964 = vmatmul.bf16.gmra.mxu0 %v1899
        %v1965 = vpop.f32.mrf.mxu0
        %v1966 = vadd.f32 %v1856, %v1965
        %v1967 = vpop.f32.mrf.mxu0
        %v1968 = vadd.f32 %v1856, %v1967
        %1969 = vmatmul.bf16.gmra.mxu0 %v1902
        %v1970 = vpop.f32.mrf.mxu0
        %v1971 = vadd.f32 %v1856, %v1970
        %v1972 = vpop.f32.mrf.mxu0
        %v1973 = vadd.f32 %v1856, %v1972
        %1974 = vmatmul.bf16.gmra.mxu0 %v1905
        %v1975 = vpop.f32.mrf.mxu0
        %v1976 = vadd.f32 %v1856, %v1975
        %v1977 = vpop.f32.mrf.mxu0
        %v1978 = vadd.f32 %v1856, %v1977
        %1979 = vmatmul.bf16.gmra.mxu0 %v1908
        %v1980 = vpop.f32.mrf.mxu0
        %v1981 = vadd.f32 %v1856, %v1980
        %v1982 = vpop.f32.mrf.mxu0
        %v1983 = vadd.f32 %v1856, %v1982
        %1984 = vmatmul.bf16.gmra.mxu0 %v1911
        %v1985 = vpop.f32.mrf.mxu0
        %v1986 = vadd.f32 %v1856, %v1985
        %v1987 = vpop.f32.mrf.mxu0
        %v1988 = vadd.f32 %v1856, %v1987
        %1989 = vmatmul.bf16.gmra.mxu0 %v1914
        %v1990 = vpop.f32.mrf.mxu0
        %v1991 = vadd.f32 %v1856, %v1990
        %v1992 = vpop.f32.mrf.mxu0
        %v1993 = vadd.f32 %v1856, %v1992
        %1994 = vmatmul.bf16.gmra.mxu0 %v1917
        %v1995 = vpop.f32.mrf.mxu0
        %v1996 = vadd.f32 %v1856, %v1995
        %v1997 = vpop.f32.mrf.mxu0
        %v1998 = vadd.f32 %v1856, %v1997
        %1999 = vmatmul.bf16.gmra.mxu0 %v1920
        %v2000 = vpop.f32.mrf.mxu0
        %v2001 = vadd.f32 %v1856, %v2000
        %v2002 = vpop.f32.mrf.mxu0
        %v2003 = vadd.f32 %v1856, %v2002
        %2004 = vmatmul.bf16.gmra.mxu0 %v1923
        %v2005 = vpop.f32.mrf.mxu0
        %v2006 = vadd.f32 %v1856, %v2005
        %v2007 = vpop.f32.mrf.mxu0
        %v2008 = vadd.f32 %v1856, %v2007
        %2009 = vmatmul.bf16.gmra.mxu0 %v1926
        %v2010 = vpop.f32.mrf.mxu0
        %v2011 = vadd.f32 %v1856, %v2010
        %v2012 = vpop.f32.mrf.mxu0
        %v2013 = vadd.f32 %v1856, %v2012
        %2014 = vmatmul.bf16.gmra.mxu0 %v1929
        %v2015 = vpop.f32.mrf.mxu0
        %v2016 = vadd.f32 %v1856, %v2015
        %v2017 = vpop.f32.mrf.mxu0
        %v2018 = vadd.f32 %v1856, %v2017
        %2019 = vdwg.mxu0
        %2020 = vmax.xlane.f32.xlu0 %v1941
        %v2021 = vpop.xlane.xlu0 %2020
        %2022 = vmax.xlane.f32.xlu0 %v1943
        %v2023 = vpop.xlane.xlu0 %2022
        %2024 = vmax.xlane.f32.xlu0 %v1946
        %v2025 = vpop.xlane.xlu0 %2024
        %2026 = vmax.xlane.f32.xlu0 %v1948
        %v2027 = vpop.xlane.xlu0 %2026
        %2028 = vmax.xlane.f32.xlu0 %v1951
        %v2029 = vpop.xlane.xlu0 %2028
        %2030 = vmax.xlane.f32.xlu0 %v1953
        %v2031 = vpop.xlane.xlu0 %2030
        %2032 = vmax.xlane.f32.xlu0 %v1956
        %v2033 = vpop.xlane.xlu0 %2032
        %2034 = vmax.xlane.f32.xlu0 %v1958
        %v2035 = vpop.xlane.xlu0 %2034
        %2036 = vmax.xlane.f32.xlu0 %v1961
        %v2037 = vpop.xlane.xlu0 %2036
        %2038 = vmax.xlane.f32.xlu0 %v1963
        %v2039 = vpop.xlane.xlu0 %2038
        %2040 = vmax.xlane.f32.xlu0 %v1966
        %v2041 = vpop.xlane.xlu0 %2040
        %2042 = vmax.xlane.f32.xlu0 %v1968
        %v2043 = vpop.xlane.xlu0 %2042
        %2044 = vmax.xlane.f32.xlu0 %v1971
        %v2045 = vpop.xlane.xlu0 %2044
        %2046 = vmax.xlane.f32.xlu0 %v1973
        %v2047 = vpop.xlane.xlu0 %2046
        %2048 = vmax.xlane.f32.xlu0 %v1976
        %v2049 = vpop.xlane.xlu0 %2048
        %2050 = vmax.xlane.f32.xlu0 %v1978
        %v2051 = vpop.xlane.xlu0 %2050
        %2052 = vmax.xlane.f32.xlu0 %v1981
        %v2053 = vpop.xlane.xlu0 %2052
        %2054 = vmax.xlane.f32.xlu0 %v1983
        %v2055 = vpop.xlane.xlu0 %2054
        %2056 = vmax.xlane.f32.xlu0 %v1986
        %v2057 = vpop.xlane.xlu0 %2056
        %2058 = vmax.xlane.f32.xlu0 %v1988
        %v2059 = vpop.xlane.xlu0 %2058
        %2060 = vmax.xlane.f32.xlu0 %v1991
        %v2061 = vpop.xlane.xlu0 %2060
        %2062 = vmax.xlane.f32.xlu0 %v1993
        %v2063 = vpop.xlane.xlu0 %2062
        %2064 = vmax.xlane.f32.xlu0 %v1996
        %v2065 = vpop.xlane.xlu0 %2064
        %2066 = vmax.xlane.f32.xlu0 %v1998
        %v2067 = vpop.xlane.xlu0 %2066
        %2068 = vmax.xlane.f32.xlu0 %v2001
        %v2069 = vpop.xlane.xlu0 %2068
        %2070 = vmax.xlane.f32.xlu0 %v2003
        %v2071 = vpop.xlane.xlu0 %2070
        %2072 = vmax.xlane.f32.xlu0 %v2006
        %v2073 = vpop.xlane.xlu0 %2072
        %2074 = vmax.xlane.f32.xlu0 %v2008
        %v2075 = vpop.xlane.xlu0 %2074
        %2076 = vmax.xlane.f32.xlu0 %v2011
        %v2077 = vpop.xlane.xlu0 %2076
        %2078 = vmax.xlane.f32.xlu0 %v2013
        %v2079 = vpop.xlane.xlu0 %2078
        %2080 = vmax.xlane.f32.xlu0 %v2016
        %v2081 = vpop.xlane.xlu0 %2080
        %2082 = vmax.xlane.f32.xlu0 %v2018
        %v2083 = vpop.xlane.xlu0 %2082
        %v2084 = vsub.f32 %v1941, %v2021
        %v2085 = vsub.f32 %v1943, %v2023
        %v2086 = vsub.f32 %v1946, %v2025
        %v2087 = vsub.f32 %v1948, %v2027
        %v2088 = vsub.f32 %v1951, %v2029
        %v2089 = vsub.f32 %v1953, %v2031
        %v2090 = vsub.f32 %v1956, %v2033
        %v2091 = vsub.f32 %v1958, %v2035
        %v2092 = vsub.f32 %v1961, %v2037
        %v2093 = vsub.f32 %v1963, %v2039
        %v2094 = vsub.f32 %v1966, %v2041
        %v2095 = vsub.f32 %v1968, %v2043
        %v2096 = vsub.f32 %v1971, %v2045
        %v2097 = vsub.f32 %v1973, %v2047
        %v2098 = vsub.f32 %v1976, %v2049
        %v2099 = vsub.f32 %v1978, %v2051
        %v2100 = vsub.f32 %v1981, %v2053
        %v2101 = vsub.f32 %v1983, %v2055
        %v2102 = vsub.f32 %v1986, %v2057
        %v2103 = vsub.f32 %v1988, %v2059
        %v2104 = vsub.f32 %v1991, %v2061
        %v2105 = vsub.f32 %v1993, %v2063
        %v2106 = vsub.f32 %v1996, %v2065
        %v2107 = vsub.f32 %v1998, %v2067
        %v2108 = vsub.f32 %v2001, %v2069
        %v2109 = vsub.f32 %v2003, %v2071
        %v2110 = vsub.f32 %v2006, %v2073
        %v2111 = vsub.f32 %v2008, %v2075
        %v2112 = vsub.f32 %v2011, %v2077
        %v2113 = vsub.f32 %v2013, %v2079
        %v2114 = vsub.f32 %v2016, %v2081
        %v2115 = vsub.f32 %v2018, %v2083
        %v2116 = vmul.f32 %v2084, 1.442695
        %v2117 = vpow.pop %v2116
        %v2118 = vmul.f32 %v2085, 1.442695
        %v2119 = vpow.pop %v2118
        %v2120 = vmul.f32 %v2086, 1.442695
        %v2121 = vpow.pop %v2120
        %v2122 = vmul.f32 %v2087, 1.442695
        %v2123 = vpow.pop %v2122
        %v2124 = vmul.f32 %v2088, 1.442695
        %v2125 = vpow.pop %v2124
        %v2126 = vmul.f32 %v2089, 1.442695
        %v2127 = vpow.pop %v2126
        %v2128 = vmul.f32 %v2090, 1.442695
        %v2129 = vpow.pop %v2128
        %v2130 = vmul.f32 %v2091, 1.442695
        %v2131 = vpow.pop %v2130
        %v2132 = vmul.f32 %v2092, 1.442695
        %v2133 = vpow.pop %v2132
        %v2134 = vmul.f32 %v2093, 1.442695
        %v2135 = vpow.pop %v2134
        %v2136 = vmul.f32 %v2094, 1.442695
        %v2137 = vpow.pop %v2136
        %v2138 = vmul.f32 %v2095, 1.442695
        %v2139 = vpow.pop %v2138
        %v2140 = vmul.f32 %v2096, 1.442695
        %v2141 = vpow.pop %v2140
        %v2142 = vmul.f32 %v2097, 1.442695
        %v2143 = vpow.pop %v2142
        %v2144 = vmul.f32 %v2098, 1.442695
        %v2145 = vpow.pop %v2144
        %v2146 = vmul.f32 %v2099, 1.442695
        %v2147 = vpow.pop %v2146
        %v2148 = vmul.f32 %v2100, 1.442695
        %v2149 = vpow.pop %v2148
        %v2150 = vmul.f32 %v2101, 1.442695
        %v2151 = vpow.pop %v2150
        %v2152 = vmul.f32 %v2102, 1.442695
        %v2153 = vpow.pop %v2152
        %v2154 = vmul.f32 %v2103, 1.442695
        %v2155 = vpow.pop %v2154
        %v2156 = vmul.f32 %v2104, 1.442695
        %v2157 = vpow.pop %v2156
        %v2158 = vmul.f32 %v2105, 1.442695
        %v2159 = vpow.pop %v2158
        %v2160 = vmul.f32 %v2106, 1.442695
        %v2161 = vpow.pop %v2160
        %v2162 = vmul.f32 %v2107, 1.442695
        %v2163 = vpow.pop %v2162
        %v2164 = vmul.f32 %v2108, 1.442695
        %v2165 = vpow.pop %v2164
        %v2166 = vmul.f32 %v2109, 1.442695
        %v2167 = vpow.pop %v2166
        %v2168 = vmul.f32 %v2110, 1.442695
        %v2169 = vpow.pop %v2168
        %v2170 = vmul.f32 %v2111, 1.442695
        %v2171 = vpow.pop %v2170
        %v2172 = vmul.f32 %v2112, 1.442695
        %v2173 = vpow.pop %v2172
        %v2174 = vmul.f32 %v2113, 1.442695
        %v2175 = vpow.pop %v2174
        %v2176 = vmul.f32 %v2114, 1.442695
        %v2177 = vpow.pop %v2176
        %v2178 = vmul.f32 %v2115, 1.442695
        %v2179 = vpow.pop %v2178
        %2180 = vadd.xlane.f32.xlu0 %v2117
        %v2181 = vpop.xlane.xlu0 %2180
        %2182 = vadd.xlane.f32.xlu0 %v2119
        %v2183 = vpop.xlane.xlu0 %2182
        %2184 = vadd.xlane.f32.xlu0 %v2121
        %v2185 = vpop.xlane.xlu0 %2184
        %2186 = vadd.xlane.f32.xlu0 %v2123
        %v2187 = vpop.xlane.xlu0 %2186
        %2188 = vadd.xlane.f32.xlu0 %v2125
        %v2189 = vpop.xlane.xlu0 %2188
        %2190 = vadd.xlane.f32.xlu0 %v2127
        %v2191 = vpop.xlane.xlu0 %2190
        %2192 = vadd.xlane.f32.xlu0 %v2129
        %v2193 = vpop.xlane.xlu0 %2192
        %2194 = vadd.xlane.f32.xlu0 %v2131
        %v2195 = vpop.xlane.xlu0 %2194
        %2196 = vadd.xlane.f32.xlu0 %v2133
        %v2197 = vpop.xlane.xlu0 %2196
        %2198 = vadd.xlane.f32.xlu0 %v2135
        %v2199 = vpop.xlane.xlu0 %2198
        %2200 = vadd.xlane.f32.xlu0 %v2137
        %v2201 = vpop.xlane.xlu0 %2200
        %2202 = vadd.xlane.f32.xlu0 %v2139
        %v2203 = vpop.xlane.xlu0 %2202
        %2204 = vadd.xlane.f32.xlu0 %v2141
        %v2205 = vpop.xlane.xlu0 %2204
        %2206 = vadd.xlane.f32.xlu0 %v2143
        %v2207 = vpop.xlane.xlu0 %2206
        %2208 = vadd.xlane.f32.xlu0 %v2145
        %v2209 = vpop.xlane.xlu0 %2208
        %2210 = vadd.xlane.f32.xlu0 %v2147
        %v2211 = vpop.xlane.xlu0 %2210
        %2212 = vadd.xlane.f32.xlu0 %v2149
        %v2213 = vpop.xlane.xlu0 %2212
        %2214 = vadd.xlane.f32.xlu0 %v2151
        %v2215 = vpop.xlane.xlu0 %2214
        %2216 = vadd.xlane.f32.xlu0 %v2153
        %v2217 = vpop.xlane.xlu0 %2216
        %2218 = vadd.xlane.f32.xlu0 %v2155
        %v2219 = vpop.xlane.xlu0 %2218
        %2220 = vadd.xlane.f32.xlu0 %v2157
        %v2221 = vpop.xlane.xlu0 %2220
        %2222 = vadd.xlane.f32.xlu0 %v2159
        %v2223 = vpop.xlane.xlu0 %2222
        %2224 = vadd.xlane.f32.xlu0 %v2161
        %v2225 = vpop.xlane.xlu0 %2224
        %2226 = vadd.xlane.f32.xlu0 %v2163
        %v2227 = vpop.xlane.xlu0 %2226
        %2228 = vadd.xlane.f32.xlu0 %v2165
        %v2229 = vpop.xlane.xlu0 %2228
        %2230 = vadd.xlane.f32.xlu0 %v2167
        %v2231 = vpop.xlane.xlu0 %2230
        %2232 = vadd.xlane.f32.xlu0 %v2169
        %v2233 = vpop.xlane.xlu0 %2232
        %2234 = vadd.xlane.f32.xlu0 %v2171
        %v2235 = vpop.xlane.xlu0 %2234
        %2236 = vadd.xlane.f32.xlu0 %v2173
        %v2237 = vpop.xlane.xlu0 %2236
        %2238 = vadd.xlane.f32.xlu0 %v2175
        %v2239 = vpop.xlane.xlu0 %2238
        %2240 = vadd.xlane.f32.xlu0 %v2177
        %v2241 = vpop.xlane.xlu0 %2240
        %2242 = vadd.xlane.f32.xlu0 %v2179
        %v2243 = vpop.xlane.xlu0 %2242
        %v2244 = vlog2.pop %v2181
        %v2245 = vmul.f32 %v2244, 0.6931472
        %v2246 = vlog2.pop %v2183
        %v2247 = vmul.f32 %v2246, 0.6931472
        %v2248 = vlog2.pop %v2185
        %v2249 = vmul.f32 %v2248, 0.6931472
        %v2250 = vlog2.pop %v2187
        %v2251 = vmul.f32 %v2250, 0.6931472
        %v2252 = vlog2.pop %v2189
        %v2253 = vmul.f32 %v2252, 0.6931472
        %v2254 = vlog2.pop %v2191
        %v2255 = vmul.f32 %v2254, 0.6931472
        %v2256 = vlog2.pop %v2193
        %v2257 = vmul.f32 %v2256, 0.6931472
        %v2258 = vlog2.pop %v2195
        %v2259 = vmul.f32 %v2258, 0.6931472
        %v2260 = vlog2.pop %v2197
        %v2261 = vmul.f32 %v2260, 0.6931472
        %v2262 = vlog2.pop %v2199
        %v2263 = vmul.f32 %v2262, 0.6931472
        %v2264 = vlog2.pop %v2201
        %v2265 = vmul.f32 %v2264, 0.6931472
        %v2266 = vlog2.pop %v2203
        %v2267 = vmul.f32 %v2266, 0.6931472
        %v2268 = vlog2.pop %v2205
        %v2269 = vmul.f32 %v2268, 0.6931472
        %v2270 = vlog2.pop %v2207
        %v2271 = vmul.f32 %v2270, 0.6931472
        %v2272 = vlog2.pop %v2209
        %v2273 = vmul.f32 %v2272, 0.6931472
        %v2274 = vlog2.pop %v2211
        %v2275 = vmul.f32 %v2274, 0.6931472
        %v2276 = vlog2.pop %v2213
        %v2277 = vmul.f32 %v2276, 0.6931472
        %v2278 = vlog2.pop %v2215
        %v2279 = vmul.f32 %v2278, 0.6931472
        %v2280 = vlog2.pop %v2217
        %v2281 = vmul.f32 %v2280, 0.6931472
        %v2282 = vlog2.pop %v2219
        %v2283 = vmul.f32 %v2282, 0.6931472
        %v2284 = vlog2.pop %v2221
        %v2285 = vmul.f32 %v2284, 0.6931472
        %v2286 = vlog2.pop %v2223
        %v2287 = vmul.f32 %v2286, 0.6931472
        %v2288 = vlog2.pop %v2225
        %v2289 = vmul.f32 %v2288, 0.6931472
        %v2290 = vlog2.pop %v2227
        %v2291 = vmul.f32 %v2290, 0.6931472
        %v2292 = vlog2.pop %v2229
        %v2293 = vmul.f32 %v2292, 0.6931472
        %v2294 = vlog2.pop %v2231
        %v2295 = vmul.f32 %v2294, 0.6931472
        %v2296 = vlog2.pop %v2233
        %v2297 = vmul.f32 %v2296, 0.6931472
        %v2298 = vlog2.pop %v2235
        %v2299 = vmul.f32 %v2298, 0.6931472
        %v2300 = vlog2.pop %v2237
        %v2301 = vmul.f32 %v2300, 0.6931472
        %v2302 = vlog2.pop %v2239
        %v2303 = vmul.f32 %v2302, 0.6931472
        %v2304 = vlog2.pop %v2241
        %v2305 = vmul.f32 %v2304, 0.6931472
        %v2306 = vlog2.pop %v2243
        %v2307 = vmul.f32 %v2306, 0.6931472
        %v2308 = vsub.f32 %v2084, %v2245
        %v2309 = vsub.f32 %v2085, %v2247
        %v2310 = vsub.f32 %v2086, %v2249
        %v2311 = vsub.f32 %v2087, %v2251
        %v2312 = vsub.f32 %v2088, %v2253
        %v2313 = vsub.f32 %v2089, %v2255
        %v2314 = vsub.f32 %v2090, %v2257
        %v2315 = vsub.f32 %v2091, %v2259
        %v2316 = vsub.f32 %v2092, %v2261
        %v2317 = vsub.f32 %v2093, %v2263
        %v2318 = vsub.f32 %v2094, %v2265
        %v2319 = vsub.f32 %v2095, %v2267
        %v2320 = vsub.f32 %v2096, %v2269
        %v2321 = vsub.f32 %v2097, %v2271
        %v2322 = vsub.f32 %v2098, %v2273
        %v2323 = vsub.f32 %v2099, %v2275
        %v2324 = vsub.f32 %v2100, %v2277
        %v2325 = vsub.f32 %v2101, %v2279
        %v2326 = vsub.f32 %v2102, %v2281
        %v2327 = vsub.f32 %v2103, %v2283
        %v2328 = vsub.f32 %v2104, %v2285
        %v2329 = vsub.f32 %v2105, %v2287
        %v2330 = vsub.f32 %v2106, %v2289
        %v2331 = vsub.f32 %v2107, %v2291
        %v2332 = vsub.f32 %v2108, %v2293
        %v2333 = vsub.f32 %v2109, %v2295
        %v2334 = vsub.f32 %v2110, %v2297
        %v2335 = vsub.f32 %v2111, %v2299
        %v2336 = vsub.f32 %v2112, %v2301
        %v2337 = vsub.f32 %v2113, %v2303
        %v2338 = vsub.f32 %v2114, %v2305
        %v2339 = vsub.f32 %v2115, %v2307
        %2340 = vst [vmem:[%s218] sm:$0xff] %v2308
        %2341 = vst [vmem:[%s218 + $0x8] sm:$0xff] %v2309
        %2342 = vst [vmem:[%s218 + $0x10] sm:$0xff] %v2310
        %2343 = vst [vmem:[%s218 + $0x18] sm:$0xff] %v2311
        %2344 = vst [vmem:[%s218 + $0x20] sm:$0xff] %v2312
        %2345 = vst [vmem:[%s218 + $0x28] sm:$0xff] %v2313
        %2346 = vst [vmem:[%s218 + $0x30] sm:$0xff] %v2314
        %2347 = vst [vmem:[%s218 + $0x38] sm:$0xff] %v2315
        %2348 = vst [vmem:[%s218 + $0x40] sm:$0xff] %v2316
        %2349 = vst [vmem:[%s218 + $0x48] sm:$0xff] %v2317
        %2350 = vst [vmem:[%s218 + $0x50] sm:$0xff] %v2318
        %2351 = vst [vmem:[%s218 + $0x58] sm:$0xff] %v2319
        %2352 = vst [vmem:[%s218 + $0x60] sm:$0xff] %v2320
        %2353 = vst [vmem:[%s218 + $0x68] sm:$0xff] %v2321
        %2354 = vst [vmem:[%s218 + $0x70] sm:$0xff] %v2322
        %2355 = vst [vmem:[%s218 + $0x78] sm:$0xff] %v2323
        %2356 = vst [vmem:[%s218 + $0x80] sm:$0xff] %v2324
        %2357 = vst [vmem:[%s218 + $0x88] sm:$0xff] %v2325
        %2358 = vst [vmem:[%s218 + $0x90] sm:$0xff] %v2326
        %2359 = vst [vmem:[%s218 + $0x98] sm:$0xff] %v2327
        %2360 = vst [vmem:[%s218 + $0xa0] sm:$0xff] %v2328
        %2361 = vst [vmem:[%s218 + $0xa8] sm:$0xff] %v2329
        %2362 = vst [vmem:[%s218 + $0xb0] sm:$0xff] %v2330
        %2363 = vst [vmem:[%s218 + $0xb8] sm:$0xff] %v2331
        %2364 = vst [vmem:[%s218 + $0xc0] sm:$0xff] %v2332
        %2365 = vst [vmem:[%s218 + $0xc8] sm:$0xff] %v2333
        %2366 = vst [vmem:[%s218 + $0xd0] sm:$0xff] %v2334
        %2367 = vst [vmem:[%s218 + $0xd8] sm:$0xff] %v2335
        %2368 = vst [vmem:[%s218 + $0xe0] sm:$0xff] %v2336
        %2369 = vst [vmem:[%s218 + $0xe8] sm:$0xff] %v2337
        %2370 = vst [vmem:[%s218 + $0xf0] sm:$0xff] %v2338
        %2371 = vst [vmem:[%s218 + $0xf8] sm:$0xff] %v2339
        %s2372 = sand.u32 %s137, 1
        %s2373 = scalar_lea.sflag [#allocation3], %s2372
        %s2374 = sand.u32 %s137, 1
        %s2375 = smul.addr %s2374, 256
        %s2376 = scalar_lea.vmem [#allocation2], %s2375
        // Predicated region
        $region41: #{tpu_custom_call.1} parent=39 // pred_check
          %p2377 = pneg %p147
        $region42: #{tpu_custom_call.1} parent=39 // pred_check_branch
          %2379 = sbr.rel (%p2377) target = $region44
        $region43: #{tpu_custom_call.1} parent=39 // pred_region
          %s2380 = smul.u32 32, %s19
          %2382 = vsyncadd %s2373, 0
          %s2383 = smul.addr %s2380, 8
          %s2384 = scalar_lea.hbm %s5, %s2383
          %s2385 = sshll.u32 %s2376, 4
          %s2386 = int_to_ptr.vmem [resolvable:$true] %s2385
          %s2387 = sshll.u32 %s2384, 4
          %s2388 = int_to_ptr.hbm [resolvable:$true] %s2387
          %2393 = dma.vmem_to_hbm [thread:$0]  %s2386, 4096, %s2388, %s2373, 128, 128, 8
        $region44: #{tpu_custom_call.1} parent=39 // pred_fallthru
          _
      $region40: #{tpu_custom_call.1} parent=5 // pred_fallthru
        _
      %p2394 = scmp.le.s32.totalorder 2, %s14
      // Predicated region
      $region45: #{tpu_custom_call.1} parent=5 // pred_check
        %p2395 = pneg %p2394
      $region46: #{tpu_custom_call.1} parent=5 // pred_check_branch
        %2397 = sbr.rel (%p2395) target = $region48
      $region47: #{tpu_custom_call.1} parent=5 // pred_region
        %s2398 = ssub.s32 %s14, 2
        // Predicated region
        $region49: #{tpu_custom_call.1} parent=47 // pred_check
          %p2399 = pneg %p153
        $region50: #{tpu_custom_call.1} parent=47 // pred_check_branch
          %2401 = sbr.rel (%p2399) target = $region52
        $region51: #{tpu_custom_call.1} parent=47 // pred_region
          %s2402 = sand.u32 %s138, 1
          %s2403 = scalar_lea.sflag [#allocation3], %s2402
          %s2404 = sand.u32 %s138, 1
          %s2405 = smul.addr %s2404, 256
          %s2406 = scalar_lea.vmem [#allocation2], %s2405
          %2408 = dma.done %s2403, 4096
        $region52: #{tpu_custom_call.1} parent=47 // pred_fallthru
          _
      $region48: #{tpu_custom_call.1} parent=5 // pred_fallthru
        _
    $region6: #{tpu_custom_call.1} parent=1 // loop_footer
      %s18 = sadd.s32 1, %s14
    $region7: #{tpu_custom_call.1} parent=1 // loop_footer_branch
      %13 = sbr.rel target = $region3
    $region8: #{tpu_custom_call.1} parent=1 // loop_exit
      _
    %2409 = vsyncpa [#allocation3], 1
    %s2410 = scalar_lea.sflag [#allocation3], 1
    %2411 = vsyncpa %s2410, 1

</llo_original>
